<compile_context>
chip_gen: v5e
topology: v5e:2x2
jax: 0.10.0
libtpu: 0.0.40
codegen_flags: <defaults>
</compile_context>

<pallas_src>
import functools

import jax
import jax.numpy as jnp
import numpy as np
from jax import lax
from jax.experimental import pallas as pl
from jax.experimental.pallas import tpu as pltpu


# ----------------------------------------------------------------------------
# Host-side constant operators (depend only on H / W, not on data).
# ----------------------------------------------------------------------------
def _bilinear_up2_matrix(n):
    """U (2n, n): F.interpolate(scale_factor=2, bilinear, align_corners=False)."""
    u = np.zeros((2 * n, n), np.float32)
    for i in range(n):
        u[2 * i, i] += 0.75
        u[2 * i, max(i - 1, 0)] += 0.25
        u[2 * i + 1, i] += 0.75
        u[2 * i + 1, min(i + 1, n - 1)] += 0.25
    return u


def _shifted_up2_ops(n):
    """[S_d @ U for d in (-1, 0, 1)]: 2x upsample fused with the zero-padded
    shift by d (= the 3 conv taps along one spatial axis). Shape (2n, n)."""
    u = _bilinear_up2_matrix(n)
    ops = []
    for d in (-1, 0, 1):
        s = np.zeros((2 * n, 2 * n), np.float32)
        for r in range(2 * n):
            j = r + d
            if 0 <= j < 2 * n:
                s[r, j] = 1.0
        ops.append(s @ u)
    return ops


# ----------------------------------------------------------------------------
# Pallas kernel: upsample + 3x3 conv + InstanceNorm2d + ReLU, nb samples/step.
# ----------------------------------------------------------------------------
def _resize_conv_kernel(x_ref, d_ref, a_ref, blk_ref, blkt_ref, o_ref, *,
                        nb, cin, cout, h, w):
    # x_ref   : (nb, Cin, H, W)          f32  VMEM  raw NCHW samples
    # d_ref   : (Cin*W, 3*Cout*2W)       bf16 VMEM  folded (W-up + kx taps + conv W)
    # a_ref   : (3, 2H, H)               bf16 VMEM  H-upsample fused with ky taps
    # blk_ref : (Cout*2W, Cout)          f32  VMEM  0/1 per-channel block indicator
    # blkt_ref: (Cout, Cout*2W)          f32  VMEM  its transpose (broadcast back)
    # o_ref   : (nb, 2H, Cout*2W)        f32  VMEM  lane-dense output slab
    h2, w2 = 2 * h, 2 * w
    cw2 = cout * w2
    inv_n = 1.0 / float(h2 * w2)

    # (1) Gather x into (nb*H, Cin*W): rows=(s, r), lanes=(ci, iw); cast bf16
    #     in-kernel (hides under the MXU; no extra HBM pass on x).
    xall = x_ref[...]
    rows = [jnp.concatenate([xall[s, ci] for ci in range(cin)], axis=1)
            for s in range(nb)]
    xb = jnp.concatenate(rows, axis=0).astype(jnp.bfloat16)        # (nb*H, Cin*W)

    # (2) MXU matmul 1: channel contraction + kx taps + W-upsample, all ky/co
    #     at once.  K = Cin*W, N = 3*Cout*2W.
    z = jnp.dot(xb, d_ref[...], preferred_element_type=jnp.float32)  # (nb*H, 3*Cout*2W)
    zb = z.astype(jnp.bfloat16)

    for s in range(nb):
        # (3) MXU matmul 2: H-upsample + ky taps, batched over (co, c) lanes.
        #     (ky lane-blocks are Cout*2W wide; multiples of 128 -> free views.)
        y = jnp.zeros((h2, cw2), jnp.float32)
        for ky in range(3):
            zs = zb[s * h:(s + 1) * h, ky * cw2:(ky + 1) * cw2]      # (H, Cout*2W)
            y = y + jnp.dot(a_ref[ky], zs, preferred_element_type=jnp.float32)

        # (4) InstanceNorm2d(affine=False, eps=1e-5), two-pass stats in f32,
        #     per-channel reduce/broadcast via 0/1 block-indicator matmuls.
        rs = jnp.sum(y, axis=0, keepdims=True)                       # (1, Cout*2W)
        mean = jnp.dot(rs, blk_ref[...],
                       preferred_element_type=jnp.float32) * inv_n   # (1, Cout)
        mean_f = jnp.dot(mean, blkt_ref[...],
                         preferred_element_type=jnp.float32)         # (1, Cout*2W)
        yc = y - mean_f
        var = jnp.dot(jnp.sum(yc * yc, axis=0, keepdims=True), blk_ref[...],
                      preferred_element_type=jnp.float32) * inv_n    # (1, Cout)
        scale = lax.rsqrt(var + 1e-5)
        scale_f = jnp.dot(scale, blkt_ref[...],
                          preferred_element_type=jnp.float32)        # (1, Cout*2W)

        # (5) ReLU + lane-dense store.
        o_ref[s] = jnp.maximum(yc * scale_f, 0.0).astype(o_ref.dtype)


# ----------------------------------------------------------------------------
# ResizeConv forward
# ----------------------------------------------------------------------------
def resize_conv_forward(x, weight, bias=None):
    """x: (N, Cin, H, W) f32, weight: (Cout, Cin, 3, 3) f32.
    `bias` is ignored: InstanceNorm2d(affine=False) subtracts the per-channel
    mean immediately after the conv, so the bias cancels exactly."""
    del bias
    n, cin, h, w = x.shape
    cout = weight.shape[0]
    h2, w2 = 2 * h, 2 * w
    cw2 = cout * w2

    # Constant operators (tiny; built once per call).
    ops_h = np.stack(_shifted_up2_ops(h))                     # (3, 2H, H)  [ky, rr, r]
    ops_w = np.stack(_shifted_up2_ops(w))                     # (3, 2W, W)  [kx, c, iw]

    # Dall[(ci, iw), (ky, co, c)] = sum_kx W[co, ci, ky, kx] * ops_w[kx, c, iw]
    dall = jnp.einsum('oiyk,kcu->iuyoc',
                      weight.astype(jnp.float32),
                      jnp.asarray(ops_w, jnp.float32))
    dall = dall.reshape(cin * w, 3 * cw2).astype(jnp.bfloat16)   # (Cin*W, 3*Cout*2W)

    aops = jnp.asarray(ops_h, jnp.bfloat16)                      # exact in bf16
    blk_np = np.repeat(np.eye(cout, dtype=np.float32), w2, axis=0)  # (Cout*2W, Cout)
    blk = jnp.asarray(blk_np)
    blkt = jnp.asarray(blk_np.T)

    # Pack several samples per grid step at toy shapes (amortizes step overhead,
    # fills matmul-1 rows).
    nb = 1
    for cand in range(min(n, 8), 0, -1):
        if n % cand == 0 and cand * h <= 512:
            nb = cand
            break

    kernel = functools.partial(_resize_conv_kernel,
                               nb=nb, cin=cin, cout=cout, h=h, w=w)
    out_lane = pl.pallas_call(
        kernel,
        out_shape=jax.ShapeDtypeStruct((n, h2, cw2), jnp.float32),
        grid_spec=pltpu.PrefetchScalarGridSpec(
            num_scalar_prefetch=0,
            grid=(n // nb,),
            in_specs=[
                pl.BlockSpec((nb, cin, h, w), lambda i: (i, 0, 0, 0)),
                pl.BlockSpec((cin * w, 3 * cw2), lambda i: (0, 0)),
                pl.BlockSpec((3, h2, h), lambda i: (0, 0, 0)),
                pl.BlockSpec((cw2, cout), lambda i: (0, 0)),
                pl.BlockSpec((cout, cw2), lambda i: (0, 0)),
            ],
            out_specs=pl.BlockSpec((nb, h2, cw2), lambda i: (i, 0, 0)),
        ),
        compiler_params=pltpu.CompilerParams(
            dimension_semantics=("parallel",),
            vmem_limit_bytes=32 * 1024 * 1024),
    )(x, dall, aops, blk, blkt)

    # Lane-dense (N, 2H, Cout*2W) slab -> NCHW (N, Cout, 2H, 2W); pure layout
    # plumbing in the wrapper.
    return out_lane.reshape(n, h2, cout, w2).transpose(0, 2, 1, 3)


# ----------------------------------------------------------------------------
# Plain-JAX reference (verification only; runs outside the kernel)
# ----------------------------------------------------------------------------
def _upsample_axis_2x(a, axis):
    hn = a.shape[axis]
    idx = jnp.arange(hn)
    a_prev = jnp.take(a, jnp.clip(idx - 1, 0, hn - 1), axis=axis)
    a_next = jnp.take(a, jnp.clip(idx + 1, 0, hn - 1), axis=axis)
    even = 0.25 * a_prev + 0.75 * a
    odd = 0.75 * a + 0.25 * a_next
    out = jnp.stack([even, odd], axis=axis + 1)
    shp = list(a.shape)
    shp[axis] = 2 * hn
    return out.reshape(shp)


def _reference_forward(x, weight):
    xu = _upsample_axis_2x(_upsample_axis_2x(x, 2), 3)
    y = lax.conv_general_dilated(
        xu, weight, window_strides=(1, 1), padding=((1, 1), (1, 1)),
        dimension_numbers=("NCHW", "OIHW", "NCHW"))
    mu = jnp.mean(y, axis=(2, 3), keepdims=True)
    var = jnp.mean((y - mu) ** 2, axis=(2, 3), keepdims=True)
    return jnp.maximum((y - mu) * lax.rsqrt(var + 1e-5), 0.0)


if __name__ == "__main__":
    key = jax.random.PRNGKey(0)
    k_x, k_w, k_b = jax.random.split(key, 3)

    N, in_C, out_C, H, W = 2, 4, 8, 16, 16
    x = jax.random.normal(k_x, (N, in_C, H, W), jnp.float32)
    weight = jax.random.normal(k_w, (out_C, in_C, 3, 3), jnp.float32) * 0.1
    bias = jax.random.normal(k_b, (out_C,), jnp.float32) * 0.1  # cancels under IN

    out = jax.block_until_ready(resize_conv_forward(x, weight, bias))
    assert out.shape == (N, out_C, 2 * H, 2 * W)
    assert bool(jnp.all(jnp.isfinite(out)))

    # Verify against a plain-JAX reference (x pre-rounded to bf16 to match the
    # kernel's MXU feed; remaining diffs are bf16 MXU-operand rounding noise,
    # which after instance-norm shows up at the ~1e-2 level).
    ref = _reference_forward(x.astype(jnp.bfloat16).astype(jnp.float32), weight)
    max_diff = float(jnp.max(jnp.abs(out - ref)))
    assert max_diff < 5e-2, max_diff

    print("KERNEL_OK")
</pallas_src>

<mosaic_0001>
module attributes {stable_mosaic.version = 11 : i64} {
  func.func @_resize_conv_kernel(%arg0: i32, %arg1: memref<2x4x16x16xf32, #tpu.memory_space<vmem>>, %arg2: memref<64x768xbf16, #tpu.memory_space<vmem>>, %arg3: memref<3x32x16xbf16, #tpu.memory_space<vmem>>, %arg4: memref<256x8xf32, #tpu.memory_space<vmem>>, %arg5: memref<8x256xf32, #tpu.memory_space<vmem>>, %arg6: memref<2x32x256xf32, #tpu.memory_space<vmem>>) attributes {dimension_semantics = [#tpu.dimension_semantics<parallel>], iteration_bounds = array<i64: 1>, scalar_prefetch = 0 : i64, scratch_operands = 0 : i64, tpu.core_type = #tpu.core_type<tc>, window_params = [{transform_indices = @transform_0, window_bounds = array<i64: 2, 4, 16, 16>}, {pipeline_mode = #tpu.pipeline_mode<synchronous>, transform_indices = @transform_1, window_bounds = array<i64: 64, 768>}, {pipeline_mode = #tpu.pipeline_mode<synchronous>, transform_indices = @transform_2, window_bounds = array<i64: 3, 32, 16>}, {pipeline_mode = #tpu.pipeline_mode<synchronous>, transform_indices = @transform_3, window_bounds = array<i64: 256, 8>}, {pipeline_mode = #tpu.pipeline_mode<synchronous>, transform_indices = @transform_4, window_bounds = array<i64: 8, 256>}, {transform_indices = @transform_5, window_bounds = array<i64: 2, 32, 256>}]} {
    %c0 = arith.constant 0 : index
    %c0_0 = arith.constant 0 : index
    %c0_1 = arith.constant 0 : index
    %c0_2 = arith.constant 0 : index
    %0 = vector.load %arg1[%c0, %c0_0, %c0_1, %c0_2] : memref<2x4x16x16xf32, #tpu.memory_space<vmem>>, vector<2x4x16x16xf32>
    %1 = vector.extract_strided_slice %0 {offsets = [0, 0, 0, 0], sizes = [1, 1, 16, 16], strides = [1, 1, 1, 1]} : vector<2x4x16x16xf32> to vector<1x1x16x16xf32>
    %2 = vector.shape_cast %1 : vector<1x1x16x16xf32> to vector<16x16xf32>
    %3 = vector.extract_strided_slice %0 {offsets = [0, 1, 0, 0], sizes = [1, 1, 16, 16], strides = [1, 1, 1, 1]} : vector<2x4x16x16xf32> to vector<1x1x16x16xf32>
    %4 = vector.shape_cast %3 : vector<1x1x16x16xf32> to vector<16x16xf32>
    %5 = vector.extract_strided_slice %0 {offsets = [0, 2, 0, 0], sizes = [1, 1, 16, 16], strides = [1, 1, 1, 1]} : vector<2x4x16x16xf32> to vector<1x1x16x16xf32>
    %6 = vector.shape_cast %5 : vector<1x1x16x16xf32> to vector<16x16xf32>
    %7 = vector.extract_strided_slice %0 {offsets = [0, 3, 0, 0], sizes = [1, 1, 16, 16], strides = [1, 1, 1, 1]} : vector<2x4x16x16xf32> to vector<1x1x16x16xf32>
    %8 = vector.shape_cast %7 : vector<1x1x16x16xf32> to vector<16x16xf32>
    %9 = tpu.concatenate %2, %4, %6, %8 in 1 : vector<16x16xf32>, vector<16x16xf32>, vector<16x16xf32>, vector<16x16xf32> -> vector<16x64xf32>
    %10 = vector.extract_strided_slice %0 {offsets = [1, 0, 0, 0], sizes = [1, 1, 16, 16], strides = [1, 1, 1, 1]} : vector<2x4x16x16xf32> to vector<1x1x16x16xf32>
    %11 = vector.shape_cast %10 : vector<1x1x16x16xf32> to vector<16x16xf32>
    %12 = vector.extract_strided_slice %0 {offsets = [1, 1, 0, 0], sizes = [1, 1, 16, 16], strides = [1, 1, 1, 1]} : vector<2x4x16x16xf32> to vector<1x1x16x16xf32>
    %13 = vector.shape_cast %12 : vector<1x1x16x16xf32> to vector<16x16xf32>
    %14 = vector.extract_strided_slice %0 {offsets = [1, 2, 0, 0], sizes = [1, 1, 16, 16], strides = [1, 1, 1, 1]} : vector<2x4x16x16xf32> to vector<1x1x16x16xf32>
    %15 = vector.shape_cast %14 : vector<1x1x16x16xf32> to vector<16x16xf32>
    %16 = vector.extract_strided_slice %0 {offsets = [1, 3, 0, 0], sizes = [1, 1, 16, 16], strides = [1, 1, 1, 1]} : vector<2x4x16x16xf32> to vector<1x1x16x16xf32>
    %17 = vector.shape_cast %16 : vector<1x1x16x16xf32> to vector<16x16xf32>
    %18 = tpu.concatenate %11, %13, %15, %17 in 1 : vector<16x16xf32>, vector<16x16xf32>, vector<16x16xf32>, vector<16x16xf32> -> vector<16x64xf32>
    %19 = tpu.concatenate %9, %18 in 0 : vector<16x64xf32>, vector<16x64xf32> -> vector<32x64xf32>
    %20 = arith.truncf %19 : vector<32x64xf32> to vector<32x64xbf16>
    %c0_3 = arith.constant 0 : index
    %c0_4 = arith.constant 0 : index
    %21 = vector.load %arg2[%c0_3, %c0_4] : memref<64x768xbf16, #tpu.memory_space<vmem>>, vector<64x768xbf16>
    %cst = arith.constant dense<0.000000e+00> : vector<32x768xf32>
    %22 = tpu.matmul %20, %21, %cst {dimension_numbers = #tpu.dot_dimension_numbers<[1], [0], [0], [1], [0, 0, 1, 1], [], []>} : vector<32x64xbf16>, vector<64x768xbf16>, vector<32x768xf32> -> vector<32x768xf32>
    %23 = arith.truncf %22 : vector<32x768xf32> to vector<32x768xbf16>
    %cst_5 = arith.constant 0.000000e+00 : f32
    %24 = vector.broadcast %cst_5 : f32 to vector<32x256xf32>
    %25 = vector.extract_strided_slice %23 {offsets = [0, 0], sizes = [16, 256], strides = [1, 1]} : vector<32x768xbf16> to vector<16x256xbf16>
    %c0_6 = arith.constant 0 : index
    %c0_7 = arith.constant 0 : index
    %c0_8 = arith.constant 0 : index
    %26 = vector.load %arg3[%c0_6, %c0_7, %c0_8] : memref<3x32x16xbf16, #tpu.memory_space<vmem>>, vector<1x32x16xbf16>
    %27 = vector.shape_cast %26 : vector<1x32x16xbf16> to vector<32x16xbf16>
    %cst_9 = arith.constant dense<0.000000e+00> : vector<32x256xf32>
    %28 = tpu.matmul %27, %25, %cst_9 {dimension_numbers = #tpu.dot_dimension_numbers<[1], [0], [0], [1], [0, 0, 1, 1], [], []>} : vector<32x16xbf16>, vector<16x256xbf16>, vector<32x256xf32> -> vector<32x256xf32>
    %29 = arith.addf %24, %28 : vector<32x256xf32>
    %30 = vector.extract_strided_slice %23 {offsets = [0, 256], sizes = [16, 256], strides = [1, 1]} : vector<32x768xbf16> to vector<16x256xbf16>
    %c1 = arith.constant 1 : index
    %c0_10 = arith.constant 0 : index
    %c0_11 = arith.constant 0 : index
    %31 = vector.load %arg3[%c1, %c0_10, %c0_11] : memref<3x32x16xbf16, #tpu.memory_space<vmem>>, vector<1x32x16xbf16>
    %32 = vector.shape_cast %31 : vector<1x32x16xbf16> to vector<32x16xbf16>
    %cst_12 = arith.constant dense<0.000000e+00> : vector<32x256xf32>
    %33 = tpu.matmul %32, %30, %cst_12 {dimension_numbers = #tpu.dot_dimension_numbers<[1], [0], [0], [1], [0, 0, 1, 1], [], []>} : vector<32x16xbf16>, vector<16x256xbf16>, vector<32x256xf32> -> vector<32x256xf32>
    %34 = arith.addf %29, %33 : vector<32x256xf32>
    %35 = vector.extract_strided_slice %23 {offsets = [0, 512], sizes = [16, 256], strides = [1, 1]} : vector<32x768xbf16> to vector<16x256xbf16>
    %c2 = arith.constant 2 : index
    %c0_13 = arith.constant 0 : index
    %c0_14 = arith.constant 0 : index
    %36 = vector.load %arg3[%c2, %c0_13, %c0_14] : memref<3x32x16xbf16, #tpu.memory_space<vmem>>, vector<1x32x16xbf16>
    %37 = vector.shape_cast %36 : vector<1x32x16xbf16> to vector<32x16xbf16>
    %cst_15 = arith.constant dense<0.000000e+00> : vector<32x256xf32>
    %38 = tpu.matmul %37, %35, %cst_15 {dimension_numbers = #tpu.dot_dimension_numbers<[1], [0], [0], [1], [0, 0, 1, 1], [], []>} : vector<32x16xbf16>, vector<16x256xbf16>, vector<32x256xf32> -> vector<32x256xf32>
    %39 = arith.addf %34, %38 : vector<32x256xf32>
    %cst_16 = arith.constant dense<0.000000e+00> : vector<256xf32>
    %40 = vector.multi_reduction <add>, %39, %cst_16 [0] : vector<32x256xf32> to vector<256xf32>
    %41 = vector.shape_cast %40 : vector<256xf32> to vector<1x256xf32>
    %c0_17 = arith.constant 0 : index
    %c0_18 = arith.constant 0 : index
    %42 = vector.load %arg4[%c0_17, %c0_18] : memref<256x8xf32, #tpu.memory_space<vmem>>, vector<256x8xf32>
    %cst_19 = arith.constant dense<0.000000e+00> : vector<1x8xf32>
    %43 = tpu.matmul %41, %42, %cst_19 {dimension_numbers = #tpu.dot_dimension_numbers<[1], [0], [0], [1], [0, 0, 1, 1], [], []>} : vector<1x256xf32>, vector<256x8xf32>, vector<1x8xf32> -> vector<1x8xf32>
    %cst_20 = arith.constant 9.765625E-4 : f32
    %44 = vector.broadcast %cst_20 : f32 to vector<1x8xf32>
    %45 = arith.mulf %43, %44 : vector<1x8xf32>
    %c0_21 = arith.constant 0 : index
    %c0_22 = arith.constant 0 : index
    %46 = vector.load %arg5[%c0_21, %c0_22] : memref<8x256xf32, #tpu.memory_space<vmem>>, vector<8x256xf32>
    %cst_23 = arith.constant dense<0.000000e+00> : vector<1x256xf32>
    %47 = tpu.matmul %45, %46, %cst_23 {dimension_numbers = #tpu.dot_dimension_numbers<[1], [0], [0], [1], [0, 0, 1, 1], [], []>} : vector<1x8xf32>, vector<8x256xf32>, vector<1x256xf32> -> vector<1x256xf32>
    %48 = vector.broadcast %47 : vector<1x256xf32> to vector<32x256xf32>
    %49 = arith.subf %39, %48 : vector<32x256xf32>
    %50 = arith.mulf %49, %49 : vector<32x256xf32>
    %cst_24 = arith.constant dense<0.000000e+00> : vector<256xf32>
    %51 = vector.multi_reduction <add>, %50, %cst_24 [0] : vector<32x256xf32> to vector<256xf32>
    %52 = vector.shape_cast %51 : vector<256xf32> to vector<1x256xf32>
    %c0_25 = arith.constant 0 : index
    %c0_26 = arith.constant 0 : index
    %53 = vector.load %arg4[%c0_25, %c0_26] : memref<256x8xf32, #tpu.memory_space<vmem>>, vector<256x8xf32>
    %cst_27 = arith.constant dense<0.000000e+00> : vector<1x8xf32>
    %54 = tpu.matmul %52, %53, %cst_27 {dimension_numbers = #tpu.dot_dimension_numbers<[1], [0], [0], [1], [0, 0, 1, 1], [], []>} : vector<1x256xf32>, vector<256x8xf32>, vector<1x8xf32> -> vector<1x8xf32>
    %cst_28 = arith.constant 9.765625E-4 : f32
    %55 = vector.broadcast %cst_28 : f32 to vector<1x8xf32>
    %56 = arith.mulf %54, %55 : vector<1x8xf32>
    %cst_29 = arith.constant 9.99999974E-6 : f32
    %57 = vector.broadcast %cst_29 : f32 to vector<1x8xf32>
    %58 = arith.addf %56, %57 : vector<1x8xf32>
    %59 = math.rsqrt %58 : vector<1x8xf32>
    %c0_30 = arith.constant 0 : index
    %c0_31 = arith.constant 0 : index
    %60 = vector.load %arg5[%c0_30, %c0_31] : memref<8x256xf32, #tpu.memory_space<vmem>>, vector<8x256xf32>
    %cst_32 = arith.constant dense<0.000000e+00> : vector<1x256xf32>
    %61 = tpu.matmul %59, %60, %cst_32 {dimension_numbers = #tpu.dot_dimension_numbers<[1], [0], [0], [1], [0, 0, 1, 1], [], []>} : vector<1x8xf32>, vector<8x256xf32>, vector<1x256xf32> -> vector<1x256xf32>
    %62 = vector.broadcast %61 : vector<1x256xf32> to vector<32x256xf32>
    %63 = arith.mulf %49, %62 : vector<32x256xf32>
    %cst_33 = arith.constant 0.000000e+00 : f32
    %64 = vector.broadcast %cst_33 : f32 to vector<32x256xf32>
    %65 = arith.maximumf %63, %64 : vector<32x256xf32>
    %c0_34 = arith.constant 0 : index
    %c0_35 = arith.constant 0 : index
    %c0_36 = arith.constant 0 : index
    %66 = vector.load %arg6[%c0_34, %c0_35, %c0_36] : memref<2x32x256xf32, #tpu.memory_space<vmem>>, vector<1x32x256xf32>
    %67 = vector.shape_cast %66 : vector<1x32x256xf32> to vector<32x256xf32>
    %68 = vector.shape_cast %65 : vector<32x256xf32> to vector<1x32x256xf32>
    tpu.vector_store %arg6[%c0_34, %c0_35, %c0_36], %68 {strides = array<i32>} : memref<2x32x256xf32, #tpu.memory_space<vmem>>, vector<1x32x256xf32>,
    %cst_37 = arith.constant 0.000000e+00 : f32
    %69 = vector.broadcast %cst_37 : f32 to vector<32x256xf32>
    %70 = vector.extract_strided_slice %23 {offsets = [16, 0], sizes = [16, 256], strides = [1, 1]} : vector<32x768xbf16> to vector<16x256xbf16>
    %c0_38 = arith.constant 0 : index
    %c0_39 = arith.constant 0 : index
    %c0_40 = arith.constant 0 : index
    %71 = vector.load %arg3[%c0_38, %c0_39, %c0_40] : memref<3x32x16xbf16, #tpu.memory_space<vmem>>, vector<1x32x16xbf16>
    %72 = vector.shape_cast %71 : vector<1x32x16xbf16> to vector<32x16xbf16>
    %cst_41 = arith.constant dense<0.000000e+00> : vector<32x256xf32>
    %73 = tpu.matmul %72, %70, %cst_41 {dimension_numbers = #tpu.dot_dimension_numbers<[1], [0], [0], [1], [0, 0, 1, 1], [], []>} : vector<32x16xbf16>, vector<16x256xbf16>, vector<32x256xf32> -> vector<32x256xf32>
    %74 = arith.addf %69, %73 : vector<32x256xf32>
    %75 = vector.extract_strided_slice %23 {offsets = [16, 256], sizes = [16, 256], strides = [1, 1]} : vector<32x768xbf16> to vector<16x256xbf16>
    %c1_42 = arith.constant 1 : index
    %c0_43 = arith.constant 0 : index
    %c0_44 = arith.constant 0 : index
    %76 = vector.load %arg3[%c1_42, %c0_43, %c0_44] : memref<3x32x16xbf16, #tpu.memory_space<vmem>>, vector<1x32x16xbf16>
    %77 = vector.shape_cast %76 : vector<1x32x16xbf16> to vector<32x16xbf16>
    %cst_45 = arith.constant dense<0.000000e+00> : vector<32x256xf32>
    %78 = tpu.matmul %77, %75, %cst_45 {dimension_numbers = #tpu.dot_dimension_numbers<[1], [0], [0], [1], [0, 0, 1, 1], [], []>} : vector<32x16xbf16>, vector<16x256xbf16>, vector<32x256xf32> -> vector<32x256xf32>
    %79 = arith.addf %74, %78 : vector<32x256xf32>
    %80 = vector.extract_strided_slice %23 {offsets = [16, 512], sizes = [16, 256], strides = [1, 1]} : vector<32x768xbf16> to vector<16x256xbf16>
    %c2_46 = arith.constant 2 : index
    %c0_47 = arith.constant 0 : index
    %c0_48 = arith.constant 0 : index
    %81 = vector.load %arg3[%c2_46, %c0_47, %c0_48] : memref<3x32x16xbf16, #tpu.memory_space<vmem>>, vector<1x32x16xbf16>
    %82 = vector.shape_cast %81 : vector<1x32x16xbf16> to vector<32x16xbf16>
    %cst_49 = arith.constant dense<0.000000e+00> : vector<32x256xf32>
    %83 = tpu.matmul %82, %80, %cst_49 {dimension_numbers = #tpu.dot_dimension_numbers<[1], [0], [0], [1], [0, 0, 1, 1], [], []>} : vector<32x16xbf16>, vector<16x256xbf16>, vector<32x256xf32> -> vector<32x256xf32>
    %84 = arith.addf %79, %83 : vector<32x256xf32>
    %cst_50 = arith.constant dense<0.000000e+00> : vector<256xf32>
    %85 = vector.multi_reduction <add>, %84, %cst_50 [0] : vector<32x256xf32> to vector<256xf32>
    %86 = vector.shape_cast %85 : vector<256xf32> to vector<1x256xf32>
    %c0_51 = arith.constant 0 : index
    %c0_52 = arith.constant 0 : index
    %87 = vector.load %arg4[%c0_51, %c0_52] : memref<256x8xf32, #tpu.memory_space<vmem>>, vector<256x8xf32>
    %cst_53 = arith.constant dense<0.000000e+00> : vector<1x8xf32>
    %88 = tpu.matmul %86, %87, %cst_53 {dimension_numbers = #tpu.dot_dimension_numbers<[1], [0], [0], [1], [0, 0, 1, 1], [], []>} : vector<1x256xf32>, vector<256x8xf32>, vector<1x8xf32> -> vector<1x8xf32>
    %cst_54 = arith.constant 9.765625E-4 : f32
    %89 = vector.broadcast %cst_54 : f32 to vector<1x8xf32>
    %90 = arith.mulf %88, %89 : vector<1x8xf32>
    %c0_55 = arith.constant 0 : index
    %c0_56 = arith.constant 0 : index
    %91 = vector.load %arg5[%c0_55, %c0_56] : memref<8x256xf32, #tpu.memory_space<vmem>>, vector<8x256xf32>
    %cst_57 = arith.constant dense<0.000000e+00> : vector<1x256xf32>
    %92 = tpu.matmul %90, %91, %cst_57 {dimension_numbers = #tpu.dot_dimension_numbers<[1], [0], [0], [1], [0, 0, 1, 1], [], []>} : vector<1x8xf32>, vector<8x256xf32>, vector<1x256xf32> -> vector<1x256xf32>
    %93 = vector.broadcast %92 : vector<1x256xf32> to vector<32x256xf32>
    %94 = arith.subf %84, %93 : vector<32x256xf32>
    %95 = arith.mulf %94, %94 : vector<32x256xf32>
    %cst_58 = arith.constant dense<0.000000e+00> : vector<256xf32>
    %96 = vector.multi_reduction <add>, %95, %cst_58 [0] : vector<32x256xf32> to vector<256xf32>
    %97 = vector.shape_cast %96 : vector<256xf32> to vector<1x256xf32>
    %c0_59 = arith.constant 0 : index
    %c0_60 = arith.constant 0 : index
    %98 = vector.load %arg4[%c0_59, %c0_60] : memref<256x8xf32, #tpu.memory_space<vmem>>, vector<256x8xf32>
    %cst_61 = arith.constant dense<0.000000e+00> : vector<1x8xf32>
    %99 = tpu.matmul %97, %98, %cst_61 {dimension_numbers = #tpu.dot_dimension_numbers<[1], [0], [0], [1], [0, 0, 1, 1], [], []>} : vector<1x256xf32>, vector<256x8xf32>, vector<1x8xf32> -> vector<1x8xf32>
    %cst_62 = arith.constant 9.765625E-4 : f32
    %100 = vector.broadcast %cst_62 : f32 to vector<1x8xf32>
    %101 = arith.mulf %99, %100 : vector<1x8xf32>
    %cst_63 = arith.constant 9.99999974E-6 : f32
    %102 = vector.broadcast %cst_63 : f32 to vector<1x8xf32>
    %103 = arith.addf %101, %102 : vector<1x8xf32>
    %104 = math.rsqrt %103 : vector<1x8xf32>
    %c0_64 = arith.constant 0 : index
    %c0_65 = arith.constant 0 : index
    %105 = vector.load %arg5[%c0_64, %c0_65] : memref<8x256xf32, #tpu.memory_space<vmem>>, vector<8x256xf32>
    %cst_66 = arith.constant dense<0.000000e+00> : vector<1x256xf32>
    %106 = tpu.matmul %104, %105, %cst_66 {dimension_numbers = #tpu.dot_dimension_numbers<[1], [0], [0], [1], [0, 0, 1, 1], [], []>} : vector<1x8xf32>, vector<8x256xf32>, vector<1x256xf32> -> vector<1x256xf32>
    %107 = vector.broadcast %106 : vector<1x256xf32> to vector<32x256xf32>
    %108 = arith.mulf %94, %107 : vector<32x256xf32>
    %cst_67 = arith.constant 0.000000e+00 : f32
    %109 = vector.broadcast %cst_67 : f32 to vector<32x256xf32>
    %110 = arith.maximumf %108, %109 : vector<32x256xf32>
    %c1_68 = arith.constant 1 : index
    %c0_69 = arith.constant 0 : index
    %c0_70 = arith.constant 0 : index
    %111 = vector.load %arg6[%c1_68, %c0_69, %c0_70] : memref<2x32x256xf32, #tpu.memory_space<vmem>>, vector<1x32x256xf32>
    %112 = vector.shape_cast %111 : vector<1x32x256xf32> to vector<32x256xf32>
    %113 = vector.shape_cast %110 : vector<32x256xf32> to vector<1x32x256xf32>
    tpu.vector_store %arg6[%c1_68, %c0_69, %c0_70], %113 {strides = array<i32>} : memref<2x32x256xf32, #tpu.memory_space<vmem>>, vector<1x32x256xf32>,
    return
  }
  func.func @transform_0(%arg0: i32) -> (i32, i32, i32, i32) {
    %c0_i32 = arith.constant 0 : i32
    %c0_i32_0 = arith.constant 0 : i32
    %c0_i32_1 = arith.constant 0 : i32
    %c0_i32_2 = arith.constant 0 : i32
    return %arg0, %c0_i32, %c0_i32_0, %c0_i32_1 : i32, i32, i32, i32
  }
  func.func @transform_1(%arg0: i32) -> (i32, i32) {
    %c0_i32 = arith.constant 0 : i32
    %c0_i32_0 = arith.constant 0 : i32
    %c0_i32_1 = arith.constant 0 : i32
    return %c0_i32, %c0_i32_0 : i32, i32
  }
  func.func @transform_2(%arg0: i32) -> (i32, i32, i32) {
    %c0_i32 = arith.constant 0 : i32
    %c0_i32_0 = arith.constant 0 : i32
    %c0_i32_1 = arith.constant 0 : i32
    %c0_i32_2 = arith.constant 0 : i32
    return %c0_i32, %c0_i32_0, %c0_i32_1 : i32, i32, i32
  }
  func.func @transform_3(%arg0: i32) -> (i32, i32) {
    %c0_i32 = arith.constant 0 : i32
    %c0_i32_0 = arith.constant 0 : i32
    %c0_i32_1 = arith.constant 0 : i32
    return %c0_i32, %c0_i32_0 : i32, i32
  }
  func.func @transform_4(%arg0: i32) -> (i32, i32) {
    %c0_i32 = arith.constant 0 : i32
    %c0_i32_0 = arith.constant 0 : i32
    %c0_i32_1 = arith.constant 0 : i32
    return %c0_i32, %c0_i32_0 : i32, i32
  }
  func.func @transform_5(%arg0: i32) -> (i32, i32, i32) {
    %c0_i32 = arith.constant 0 : i32
    %c0_i32_0 = arith.constant 0 : i32
    %c0_i32_1 = arith.constant 0 : i32
    return %arg0, %c0_i32, %c0_i32_0 : i32, i32, i32
  }
}

</mosaic_0001>

<llo_original>
// kernel: tpu_custom_call.1
$region0: #{tpu_custom_call.1}
  #allocation0 [shape = 'u32[]', space=smem, size = 0x4, offset = 0x4, fixed_abs, tag = 'smem constant byte address 0x4 - core index']
  #allocation1 [shape = 'u32[72,128]{1,0:T(1,128)}', space=vmem, size = 0x9000, scoped, tag = 'internal scratch']
  %s0 = inlined_call_operand.vmem [shape: f32[2,4,16,16], index: 0, kind: input, shape index: {}]
  %s1 = inlined_call_operand.vmem [shape: bf16[64,768], index: 1, kind: input, shape index: {}]
  %s2 = inlined_call_operand.vmem [shape: bf16[3,32,16], index: 2, kind: input, shape index: {}]
  %s3 = inlined_call_operand.vmem [shape: f32[256,8], index: 3, kind: input, shape index: {}]
  %s4 = inlined_call_operand.hbm [shape: f32[8,256], index: 4, kind: input, shape index: {}]
  %s5 = inlined_call_operand.hbm [shape: f32[2,32,256], index: 5, kind: output, shape index: {}]
  %s6 = sld [smem:[#allocation0]]
  $region34: #{tpu_custom_call.1} parent=0
    _
  %s8 = ssub.s32 1, %s6
  %s9 = scalar_select 0, %s8, %s6
  $region1: #{tpu_custom_call.1} parent=0
    #allocation2 [shape = 'u8[8192]{0}', space=vmem, size = 0x2000, scoped, tag = 'input window, operand 4, single buffered']
    #allocation3 [shape = 's32[1]{0}', space=sflag, size = 0x4, scoped, tag = 'scoped memory for tpu_custom_call.1']
    #allocation4 [shape = 's32[1]{0}', space=sflag, size = 0x4, scoped, tag = 'scoped memory for tpu_custom_call.1']
    #allocation5 [shape = 'u8[65536]{0}', space=vmem, size = 0x10000, scoped, tag = 'output window, operand 0, single buffered']
    %10 = vsyncpa [#allocation3], 0
    %11 = vsyncpa [#allocation4], 0
    // Predicated region
    $region2: #{tpu_custom_call.1} parent=1 // pred_check
      _
    $region3: #{tpu_custom_call.1} parent=1 // pred_check_branch
      %13 = sbr.rel (0) target = $region5
    $region4: #{tpu_custom_call.1} parent=1 // pred_region
      _
    $region5: #{tpu_custom_call.1} parent=1 // pred_fallthru
      _
    // Predicated region
    $region6: #{tpu_custom_call.1} parent=1 // pred_check
      _
    $region7: #{tpu_custom_call.1} parent=1 // pred_check_branch
      %15 = sbr.rel (0) target = $region9
    $region8: #{tpu_custom_call.1} parent=1 // pred_region
      _
    $region9: #{tpu_custom_call.1} parent=1 // pred_fallthru
      _
    // Predicated region
    $region10: #{tpu_custom_call.1} parent=1 // pred_check
      _
    $region11: #{tpu_custom_call.1} parent=1 // pred_check_branch
      %17 = sbr.rel (0) target = $region13
    $region12: #{tpu_custom_call.1} parent=1 // pred_region
      _
    $region13: #{tpu_custom_call.1} parent=1 // pred_fallthru
      _
    // Predicated region
    $region14: #{tpu_custom_call.1} parent=1 // pred_check
      _
    $region15: #{tpu_custom_call.1} parent=1 // pred_check_branch
      %19 = sbr.rel (0) target = $region17
    $region16: #{tpu_custom_call.1} parent=1 // pred_region
      _
    $region17: #{tpu_custom_call.1} parent=1 // pred_fallthru
      _
    // Predicated region
    $region18: #{tpu_custom_call.1} parent=1 // pred_check
      _
    $region19: #{tpu_custom_call.1} parent=1 // pred_check_branch
      %21 = sbr.rel (0) target = $region21
    $region20: #{tpu_custom_call.1} parent=1 // pred_region
      %23 = vsyncadd [#allocation3], 0
      %s25 = sshll.u32 %s4, 4
      %s26 = int_to_ptr.hbm [resolvable:$true] %s25
      %s27 = sshll.u32 [#allocation2], 4
      %s28 = int_to_ptr.vmem [resolvable:$true] %s27
      %30 = dma.hbm_to_vmem [thread:$0]  %s26, 256, %s28, [#allocation3]
    $region21: #{tpu_custom_call.1} parent=1 // pred_fallthru
      _
    // Predicated region
    $region22: #{tpu_custom_call.1} parent=1 // pred_check
      _
    $region23: #{tpu_custom_call.1} parent=1 // pred_check_branch
      %32 = sbr.rel (0) target = $region25
    $region24: #{tpu_custom_call.1} parent=1 // pred_region
      %34 = dma.done [#allocation3], 256
    $region25: #{tpu_custom_call.1} parent=1 // pred_fallthru
      _
    %v36 = vld [vmem:[%s0] sm:$0xff]
    %v37 = vld [vmem:[%s0 + $0x8] sm:$0xff]
    %v38 = vld [vmem:[%s0 + $0x10] sm:$0xff]
    %v39 = vld [vmem:[%s0 + $0x18] sm:$0xff]
    %v40 = vld [vmem:[%s0 + $0x20] sm:$0xff]
    %v41 = vld [vmem:[%s0 + $0x28] sm:$0xff]
    %v42 = vld [vmem:[%s0 + $0x30] sm:$0xff]
    %v43 = vld [vmem:[%s0 + $0x38] sm:$0xff]
    %v44 = vld [vmem:[%s0 + $0x40] sm:$0xff]
    %v45 = vld [vmem:[%s0 + $0x48] sm:$0xff]
    %v46 = vld [vmem:[%s0 + $0x50] sm:$0xff]
    %v47 = vld [vmem:[%s0 + $0x58] sm:$0xff]
    %v48 = vld [vmem:[%s0 + $0x60] sm:$0xff]
    %v49 = vld [vmem:[%s0 + $0x68] sm:$0xff]
    %v50 = vld [vmem:[%s0 + $0x70] sm:$0xff]
    %v51 = vld [vmem:[%s0 + $0x78] sm:$0xff]
    %54 = vrot.lane.b32.xlu0 %v38, 16
    %v55 = vpop.permute.xlu0 %54
    %56 = vrot.lane.b32.xlu0 %v39, 16
    %v57 = vpop.permute.xlu0 %56
    %62 = vrot.lane.b32.xlu0 %v40, 32
    %v63 = vpop.permute.xlu0 %62
    %64 = vrot.lane.b32.xlu0 %v41, 32
    %v65 = vpop.permute.xlu0 %64
    %70 = vrot.lane.b32.xlu0 %v42, 48
    %v71 = vpop.permute.xlu0 %70
    %72 = vrot.lane.b32.xlu0 %v43, 48
    %v73 = vpop.permute.xlu0 %72
    %vm76 = vcmask 130048
    %v77 = vsel %vm76, %v36, %v55
    %v78 = vsel %vm76, %v37, %v57
    %vm79 = vcmask 261120
    %v80 = vsel %vm79, %v77, %v63
    %v81 = vsel %vm79, %v78, %v65
    %vm82 = vcmask 392192
    %v83 = vsel %vm82, %v80, %v71
    %v84 = vsel %vm82, %v81, %v73
    %87 = vrot.lane.b32.xlu0 %v46, 16
    %v88 = vpop.permute.xlu0 %87
    %89 = vrot.lane.b32.xlu0 %v47, 16
    %v90 = vpop.permute.xlu0 %89
    %95 = vrot.lane.b32.xlu0 %v48, 32
    %v96 = vpop.permute.xlu0 %95
    %97 = vrot.lane.b32.xlu0 %v49, 32
    %v98 = vpop.permute.xlu0 %97
    %103 = vrot.lane.b32.xlu0 %v50, 48
    %v104 = vpop.permute.xlu0 %103
    %105 = vrot.lane.b32.xlu0 %v51, 48
    %v106 = vpop.permute.xlu0 %105
    %v109 = vsel %vm76, %v44, %v88
    %v110 = vsel %vm76, %v45, %v90
    %v111 = vsel %vm79, %v109, %v96
    %v112 = vsel %vm79, %v110, %v98
    %v113 = vsel %vm82, %v111, %v104
    %v114 = vsel %vm82, %v112, %v106
    %v115 = vpack.c.bf16 %v84, %v83
    %v116 = vpack.c.bf16 %v114, %v113
    %v117 = vld [vmem:[%s1] sm:$0xff]
    %v118 = vld [vmem:[%s1 + $0x8] sm:$0xff]
    %v119 = vld [vmem:[%s1 + $0x10] sm:$0xff]
    %v120 = vld [vmem:[%s1 + $0x18] sm:$0xff]
    %v121 = vld [vmem:[%s1 + $0x20] sm:$0xff]
    %v122 = vld [vmem:[%s1 + $0x28] sm:$0xff]
    %v123 = vld [vmem:[%s1 + $0x30] sm:$0xff]
    %v124 = vld [vmem:[%s1 + $0x38] sm:$0xff]
    %v125 = vld [vmem:[%s1 + $0x40] sm:$0xff]
    %v126 = vld [vmem:[%s1 + $0x48] sm:$0xff]
    %v127 = vld [vmem:[%s1 + $0x50] sm:$0xff]
    %v128 = vld [vmem:[%s1 + $0x58] sm:$0xff]
    %v129 = vld [vmem:[%s1 + $0x60] sm:$0xff]
    %v130 = vld [vmem:[%s1 + $0x68] sm:$0xff]
    %v131 = vld [vmem:[%s1 + $0x70] sm:$0xff]
    %v132 = vld [vmem:[%s1 + $0x78] sm:$0xff]
    %v133 = vld [vmem:[%s1 + $0x80] sm:$0xff]
    %v134 = vld [vmem:[%s1 + $0x88] sm:$0xff]
    %v135 = vld [vmem:[%s1 + $0x90] sm:$0xff]
    %v136 = vld [vmem:[%s1 + $0x98] sm:$0xff]
    %v137 = vld [vmem:[%s1 + $0xa0] sm:$0xff]
    %v138 = vld [vmem:[%s1 + $0xa8] sm:$0xff]
    %v139 = vld [vmem:[%s1 + $0xb0] sm:$0xff]
    %v140 = vld [vmem:[%s1 + $0xb8] sm:$0xff]
    %v165 = vunpack.c.l.b16 %v117
    %v166 = vunpack.c.h.b16 %v117
    %v167 = vunpack.c.l.b16 %v118
    %v168 = vunpack.c.h.b16 %v118
    %v169 = vunpack.c.l.b16 %v119
    %v170 = vunpack.c.h.b16 %v119
    %v171 = vunpack.c.l.b16 %v120
    %v172 = vunpack.c.h.b16 %v120
    %v173 = vunpack.c.l.b16 %v121
    %v174 = vunpack.c.h.b16 %v121
    %v175 = vunpack.c.l.b16 %v122
    %v176 = vunpack.c.h.b16 %v122
    %v177 = vunpack.c.l.b16 %v123
    %v178 = vunpack.c.h.b16 %v123
    %v179 = vunpack.c.l.b16 %v124
    %v180 = vunpack.c.h.b16 %v124
    %v181 = vunpack.c.l.b16 %v125
    %v182 = vunpack.c.h.b16 %v125
    %v183 = vunpack.c.l.b16 %v126
    %v184 = vunpack.c.h.b16 %v126
    %v185 = vunpack.c.l.b16 %v127
    %v186 = vunpack.c.h.b16 %v127
    %v187 = vunpack.c.l.b16 %v128
    %v188 = vunpack.c.h.b16 %v128
    %v189 = vunpack.c.l.b16 %v129
    %v190 = vunpack.c.h.b16 %v129
    %v191 = vunpack.c.l.b16 %v130
    %v192 = vunpack.c.h.b16 %v130
    %v193 = vunpack.c.l.b16 %v131
    %v194 = vunpack.c.h.b16 %v131
    %v195 = vunpack.c.l.b16 %v132
    %v196 = vunpack.c.h.b16 %v132
    %v197 = vunpack.c.l.b16 %v133
    %v198 = vunpack.c.h.b16 %v133
    %v199 = vunpack.c.l.b16 %v134
    %v200 = vunpack.c.h.b16 %v134
    %v201 = vunpack.c.l.b16 %v135
    %v202 = vunpack.c.h.b16 %v135
    %v203 = vunpack.c.l.b16 %v136
    %v204 = vunpack.c.h.b16 %v136
    %v205 = vunpack.c.l.b16 %v137
    %v206 = vunpack.c.h.b16 %v137
    %v207 = vunpack.c.l.b16 %v138
    %v208 = vunpack.c.h.b16 %v138
    %v209 = vunpack.c.l.b16 %v139
    %v210 = vunpack.c.h.b16 %v139
    %v211 = vunpack.c.l.b16 %v140
    %v212 = vunpack.c.h.b16 %v140
    %v213 = vpack.c.b16 %v171, %v165
    %v214 = vpack.c.b16 %v172, %v166
    %v215 = vpack.c.b16 %v173, %v167
    %v216 = vpack.c.b16 %v174, %v168
    %v217 = vpack.c.b16 %v175, %v169
    %v218 = vpack.c.b16 %v176, %v170
    %v219 = vpack.c.b16 %v183, %v177
    %v220 = vpack.c.b16 %v184, %v178
    %v221 = vpack.c.b16 %v185, %v179
    %v222 = vpack.c.b16 %v186, %v180
    %v223 = vpack.c.b16 %v187, %v181
    %v224 = vpack.c.b16 %v188, %v182
    %v225 = vpack.c.b16 %v195, %v189
    %v226 = vpack.c.b16 %v196, %v190
    %v227 = vpack.c.b16 %v197, %v191
    %v228 = vpack.c.b16 %v198, %v192
    %v229 = vpack.c.b16 %v199, %v193
    %v230 = vpack.c.b16 %v200, %v194
    %v231 = vpack.c.b16 %v207, %v201
    %v232 = vpack.c.b16 %v208, %v202
    %v233 = vpack.c.b16 %v209, %v203
    %v234 = vpack.c.b16 %v210, %v204
    %v235 = vpack.c.b16 %v211, %v205
    %v236 = vpack.c.b16 %v212, %v206
    %vm261 = vcmask 523264
    %v263 = vsel %vm261, %v115, 0
    %v266 = vsel %vm261, %v116, 0
    %268 = vmatpush.bf16.msra.mxu0 0
    %269 = vmatpush.bf16.msra.mxu0 0
    %270 = vmatpush.bf16.msra.mxu0 0
    %271 = vmatpush.bf16.msra.mxu0 0
    %272 = vmatpush.bf16.msra.mxu0 %v231
    %273 = vmatpush.bf16.msra.mxu0 %v225
    %274 = vmatpush.bf16.msra.mxu0 %v219
    %275 = vmatpush.bf16.msra.mxu0 %v213
    %276 = vmatmul.bf16.gmra.mxu0 %v263
    %v277 = vpop.f32.mrf.mxu0
    %v278 = vadd.f32 0.0, %v277
    %v279 = vpop.f32.mrf.mxu0
    %v280 = vadd.f32 0.0, %v279
    %281 = vmatmul.bf16.gmra.mxu0 %v266
    %v282 = vpop.f32.mrf.mxu0
    %v283 = vadd.f32 0.0, %v282
    %v284 = vpop.f32.mrf.mxu0
    %v285 = vadd.f32 0.0, %v284
    %286 = vdwg.mxu0
    %287 = vmatpush.bf16.msra.mxu0 0
    %288 = vmatpush.bf16.msra.mxu0 0
    %289 = vmatpush.bf16.msra.mxu0 0
    %290 = vmatpush.bf16.msra.mxu0 0
    %291 = vmatpush.bf16.msra.mxu0 %v232
    %292 = vmatpush.bf16.msra.mxu0 %v226
    %293 = vmatpush.bf16.msra.mxu0 %v220
    %294 = vmatpush.bf16.msra.mxu0 %v214
    %295 = vmatmul.bf16.gmra.mxu0 %v263
    %v296 = vpop.f32.mrf.mxu0
    %v297 = vadd.f32 0.0, %v296
    %v298 = vpop.f32.mrf.mxu0
    %v299 = vadd.f32 0.0, %v298
    %300 = vmatmul.bf16.gmra.mxu0 %v266
    %v301 = vpop.f32.mrf.mxu0
    %v302 = vadd.f32 0.0, %v301
    %v303 = vpop.f32.mrf.mxu0
    %v304 = vadd.f32 0.0, %v303
    %305 = vdwg.mxu0
    %306 = vmatpush.bf16.msra.mxu0 0
    %307 = vmatpush.bf16.msra.mxu0 0
    %308 = vmatpush.bf16.msra.mxu0 0
    %309 = vmatpush.bf16.msra.mxu0 0
    %310 = vmatpush.bf16.msra.mxu0 %v233
    %311 = vmatpush.bf16.msra.mxu0 %v227
    %312 = vmatpush.bf16.msra.mxu0 %v221
    %313 = vmatpush.bf16.msra.mxu0 %v215
    %314 = vmatmul.bf16.gmra.mxu0 %v263
    %v315 = vpop.f32.mrf.mxu0
    %v316 = vadd.f32 0.0, %v315
    %v317 = vpop.f32.mrf.mxu0
    %v318 = vadd.f32 0.0, %v317
    %319 = vmatmul.bf16.gmra.mxu0 %v266
    %v320 = vpop.f32.mrf.mxu0
    %v321 = vadd.f32 0.0, %v320
    %v322 = vpop.f32.mrf.mxu0
    %v323 = vadd.f32 0.0, %v322
    %324 = vdwg.mxu0
    %325 = vmatpush.bf16.msra.mxu0 0
    %326 = vmatpush.bf16.msra.mxu0 0
    %327 = vmatpush.bf16.msra.mxu0 0
    %328 = vmatpush.bf16.msra.mxu0 0
    %329 = vmatpush.bf16.msra.mxu0 %v234
    %330 = vmatpush.bf16.msra.mxu0 %v228
    %331 = vmatpush.bf16.msra.mxu0 %v222
    %332 = vmatpush.bf16.msra.mxu0 %v216
    %333 = vmatmul.bf16.gmra.mxu0 %v263
    %v334 = vpop.f32.mrf.mxu0
    %v335 = vadd.f32 0.0, %v334
    %v336 = vpop.f32.mrf.mxu0
    %v337 = vadd.f32 0.0, %v336
    %338 = vmatmul.bf16.gmra.mxu0 %v266
    %v339 = vpop.f32.mrf.mxu0
    %v340 = vadd.f32 0.0, %v339
    %v341 = vpop.f32.mrf.mxu0
    %v342 = vadd.f32 0.0, %v341
    %343 = vdwg.mxu0
    %344 = vmatpush.bf16.msra.mxu0 0
    %345 = vmatpush.bf16.msra.mxu0 0
    %346 = vmatpush.bf16.msra.mxu0 0
    %347 = vmatpush.bf16.msra.mxu0 0
    %348 = vmatpush.bf16.msra.mxu0 %v235
    %349 = vmatpush.bf16.msra.mxu0 %v229
    %350 = vmatpush.bf16.msra.mxu0 %v223
    %351 = vmatpush.bf16.msra.mxu0 %v217
    %352 = vmatmul.bf16.gmra.mxu0 %v263
    %v353 = vpop.f32.mrf.mxu0
    %v354 = vadd.f32 0.0, %v353
    %v355 = vpop.f32.mrf.mxu0
    %v356 = vadd.f32 0.0, %v355
    %357 = vmatmul.bf16.gmra.mxu0 %v266
    %v358 = vpop.f32.mrf.mxu0
    %v359 = vadd.f32 0.0, %v358
    %v360 = vpop.f32.mrf.mxu0
    %v361 = vadd.f32 0.0, %v360
    %362 = vdwg.mxu0
    %363 = vmatpush.bf16.msra.mxu0 0
    %364 = vmatpush.bf16.msra.mxu0 0
    %365 = vmatpush.bf16.msra.mxu0 0
    %366 = vmatpush.bf16.msra.mxu0 0
    %367 = vmatpush.bf16.msra.mxu0 %v236
    %368 = vmatpush.bf16.msra.mxu0 %v230
    %369 = vmatpush.bf16.msra.mxu0 %v224
    %370 = vmatpush.bf16.msra.mxu0 %v218
    %371 = vmatmul.bf16.gmra.mxu0 %v263
    %v372 = vpop.f32.mrf.mxu0
    %v373 = vadd.f32 0.0, %v372
    %v374 = vpop.f32.mrf.mxu0
    %v375 = vadd.f32 0.0, %v374
    %376 = vmatmul.bf16.gmra.mxu0 %v266
    %v377 = vpop.f32.mrf.mxu0
    %v378 = vadd.f32 0.0, %v377
    %v379 = vpop.f32.mrf.mxu0
    %v380 = vadd.f32 0.0, %v379
    %381 = vdwg.mxu0
    %v382 = vpack.c.bf16 %v297, %v278
    %v383 = vpack.c.bf16 %v335, %v316
    %v384 = vpack.c.bf16 %v373, %v354
    %v385 = vpack.c.bf16 %v299, %v280
    %v386 = vpack.c.bf16 %v337, %v318
    %v387 = vpack.c.bf16 %v375, %v356
    %v388 = vpack.c.bf16 %v302, %v283
    %v389 = vpack.c.bf16 %v340, %v321
    %v390 = vpack.c.bf16 %v378, %v359
    %v391 = vpack.c.bf16 %v304, %v285
    %v392 = vpack.c.bf16 %v342, %v323
    %v393 = vpack.c.bf16 %v380, %v361
    %v394 = vld [vmem:[%s2] sm:$0xf]
    %v395 = vld [vmem:[%s2 + $0x4] sm:$0xf]
    %v396 = vld [vmem:[%s2 + $0x8] sm:$0xf]
    %v397 = vld [vmem:[%s2 + $0xc] sm:$0xf]
    %s398 = scalar_lea.vmem %s2, 16
    %v399 = vld [vmem:[%s398] sm:$0xf]
    %v400 = vld [vmem:[%s398 + $0x4] sm:$0xf]
    %v401 = vld [vmem:[%s398 + $0x8] sm:$0xf]
    %v402 = vld [vmem:[%s398 + $0xc] sm:$0xf]
    %v407 = vunpack.c.l.b16 %v399
    %v408 = vunpack.c.l.b16 %v400
    %v409 = vunpack.c.l.b16 %v401
    %v410 = vunpack.c.l.b16 %v402
    %v411 = vpack.c.b16 %v408, %v407
    %v412 = vpack.c.b16 %v410, %v409
    %v415 = vunpack.c.l.b16 %v383
    %v416 = vunpack.c.h.b16 %v383
    %v417 = vunpack.c.l.b16 %v386
    %v418 = vunpack.c.h.b16 %v386
    %v419 = vpack.c.b16 %v417, %v415
    %v420 = vpack.c.b16 %v418, %v416
    %v424 = vsel %vm76, %v411, 0
    %v427 = vsel %vm76, %v412, 0
    %429 = vmatpush.bf16.msra.mxu0 0
    %430 = vmatpush.bf16.msra.mxu0 0
    %431 = vmatpush.bf16.msra.mxu0 0
    %432 = vmatpush.bf16.msra.mxu0 0
    %433 = vmatpush.bf16.msra.mxu0 0
    %434 = vmatpush.bf16.msra.mxu0 0
    %435 = vmatpush.bf16.msra.mxu0 0
    %436 = vmatpush.bf16.msra.mxu0 %v419
    %437 = vmatmul.bf16.gmra.mxu0 %v424
    %v438 = vpop.f32.mrf.mxu0
    %v439 = vadd.f32 0.0, %v438
    %v440 = vpop.f32.mrf.mxu0
    %v441 = vadd.f32 0.0, %v440
    %442 = vmatmul.bf16.gmra.mxu0 %v427
    %v443 = vpop.f32.mrf.mxu0
    %v444 = vadd.f32 0.0, %v443
    %v445 = vpop.f32.mrf.mxu0
    %v446 = vadd.f32 0.0, %v445
    %447 = vdwg.mxu0
    %448 = vmatpush.bf16.msra.mxu0 0
    %449 = vmatpush.bf16.msra.mxu0 0
    %450 = vmatpush.bf16.msra.mxu0 0
    %451 = vmatpush.bf16.msra.mxu0 0
    %452 = vmatpush.bf16.msra.mxu0 0
    %453 = vmatpush.bf16.msra.mxu0 0
    %454 = vmatpush.bf16.msra.mxu0 0
    %455 = vmatpush.bf16.msra.mxu0 %v420
    %456 = vmatmul.bf16.gmra.mxu0 %v424
    %v457 = vpop.f32.mrf.mxu0
    %v458 = vadd.f32 0.0, %v457
    %v459 = vpop.f32.mrf.mxu0
    %v460 = vadd.f32 0.0, %v459
    %461 = vmatmul.bf16.gmra.mxu0 %v427
    %v462 = vpop.f32.mrf.mxu0
    %v463 = vadd.f32 0.0, %v462
    %v464 = vpop.f32.mrf.mxu0
    %v465 = vadd.f32 0.0, %v464
    %466 = vdwg.mxu0
    %v471 = vunpack.c.l.b16 %v394
    %v472 = vunpack.c.l.b16 %v395
    %v473 = vunpack.c.l.b16 %v396
    %v474 = vunpack.c.l.b16 %v397
    %v475 = vpack.c.b16 %v472, %v471
    %v476 = vpack.c.b16 %v474, %v473
    %v479 = vunpack.c.l.b16 %v382
    %v480 = vunpack.c.h.b16 %v382
    %v481 = vunpack.c.l.b16 %v385
    %v482 = vunpack.c.h.b16 %v385
    %v483 = vpack.c.b16 %v481, %v479
    %v484 = vpack.c.b16 %v482, %v480
    %v488 = vsel %vm76, %v475, 0
    %v491 = vsel %vm76, %v476, 0
    %493 = vmatpush.bf16.msra.mxu0 0
    %494 = vmatpush.bf16.msra.mxu0 0
    %495 = vmatpush.bf16.msra.mxu0 0
    %496 = vmatpush.bf16.msra.mxu0 0
    %497 = vmatpush.bf16.msra.mxu0 0
    %498 = vmatpush.bf16.msra.mxu0 0
    %499 = vmatpush.bf16.msra.mxu0 0
    %500 = vmatpush.bf16.msra.mxu0 %v483
    %501 = vmatmul.bf16.gmra.mxu0 %v488
    %v502 = vpop.f32.mrf.mxu0
    %v503 = vadd.f32 %v439, %v502
    %v504 = vpop.f32.mrf.mxu0
    %v505 = vadd.f32 %v441, %v504
    %506 = vmatmul.bf16.gmra.mxu0 %v491
    %v507 = vpop.f32.mrf.mxu0
    %v508 = vadd.f32 %v444, %v507
    %v509 = vpop.f32.mrf.mxu0
    %v510 = vadd.f32 %v446, %v509
    %511 = vdwg.mxu0
    %512 = vmatpush.bf16.msra.mxu0 0
    %513 = vmatpush.bf16.msra.mxu0 0
    %514 = vmatpush.bf16.msra.mxu0 0
    %515 = vmatpush.bf16.msra.mxu0 0
    %516 = vmatpush.bf16.msra.mxu0 0
    %517 = vmatpush.bf16.msra.mxu0 0
    %518 = vmatpush.bf16.msra.mxu0 0
    %519 = vmatpush.bf16.msra.mxu0 %v484
    %520 = vmatmul.bf16.gmra.mxu0 %v488
    %v521 = vpop.f32.mrf.mxu0
    %v522 = vadd.f32 %v458, %v521
    %v523 = vpop.f32.mrf.mxu0
    %v524 = vadd.f32 %v460, %v523
    %525 = vmatmul.bf16.gmra.mxu0 %v491
    %v526 = vpop.f32.mrf.mxu0
    %v527 = vadd.f32 %v463, %v526
    %v528 = vpop.f32.mrf.mxu0
    %v529 = vadd.f32 %v465, %v528
    %530 = vdwg.mxu0
    %s531 = scalar_lea.vmem %s2, 32
    %v532 = vld [vmem:[%s531] sm:$0xf]
    %v533 = vld [vmem:[%s531 + $0x4] sm:$0xf]
    %v534 = vld [vmem:[%s531 + $0x8] sm:$0xf]
    %v535 = vld [vmem:[%s531 + $0xc] sm:$0xf]
    %v540 = vunpack.c.l.b16 %v532
    %v541 = vunpack.c.l.b16 %v533
    %v542 = vunpack.c.l.b16 %v534
    %v543 = vunpack.c.l.b16 %v535
    %v544 = vpack.c.b16 %v541, %v540
    %v545 = vpack.c.b16 %v543, %v542
    %v548 = vunpack.c.l.b16 %v384
    %v549 = vunpack.c.h.b16 %v384
    %v550 = vunpack.c.l.b16 %v387
    %v551 = vunpack.c.h.b16 %v387
    %v552 = vpack.c.b16 %v550, %v548
    %v553 = vpack.c.b16 %v551, %v549
    %v557 = vsel %vm76, %v544, 0
    %v560 = vsel %vm76, %v545, 0
    %562 = vmatpush.bf16.msra.mxu0 0
    %563 = vmatpush.bf16.msra.mxu0 0
    %564 = vmatpush.bf16.msra.mxu0 0
    %565 = vmatpush.bf16.msra.mxu0 0
    %566 = vmatpush.bf16.msra.mxu0 0
    %567 = vmatpush.bf16.msra.mxu0 0
    %568 = vmatpush.bf16.msra.mxu0 0
    %569 = vmatpush.bf16.msra.mxu0 %v552
    %570 = vmatmul.bf16.gmra.mxu0 %v557
    %v571 = vpop.f32.mrf.mxu0
    %v572 = vadd.f32 0.0, %v571
    %v573 = vpop.f32.mrf.mxu0
    %v574 = vadd.f32 0.0, %v573
    %575 = vmatmul.bf16.gmra.mxu0 %v560
    %v576 = vpop.f32.mrf.mxu0
    %v577 = vadd.f32 0.0, %v576
    %v578 = vpop.f32.mrf.mxu0
    %v579 = vadd.f32 0.0, %v578
    %580 = vdwg.mxu0
    %581 = vmatpush.bf16.msra.mxu0 0
    %582 = vmatpush.bf16.msra.mxu0 0
    %583 = vmatpush.bf16.msra.mxu0 0
    %584 = vmatpush.bf16.msra.mxu0 0
    %585 = vmatpush.bf16.msra.mxu0 0
    %586 = vmatpush.bf16.msra.mxu0 0
    %587 = vmatpush.bf16.msra.mxu0 0
    %588 = vmatpush.bf16.msra.mxu0 %v553
    %589 = vmatmul.bf16.gmra.mxu0 %v557
    %v590 = vpop.f32.mrf.mxu0
    %v591 = vadd.f32 0.0, %v590
    %v592 = vpop.f32.mrf.mxu0
    %v593 = vadd.f32 0.0, %v592
    %594 = vmatmul.bf16.gmra.mxu0 %v560
    %v595 = vpop.f32.mrf.mxu0
    %v596 = vadd.f32 0.0, %v595
    %v597 = vpop.f32.mrf.mxu0
    %v598 = vadd.f32 0.0, %v597
    %599 = vdwg.mxu0
    %v600 = vadd.f32 %v503, %v572
    %v601 = vadd.f32 %v522, %v591
    %v602 = vadd.f32 %v505, %v574
    %v603 = vadd.f32 %v524, %v593
    %v604 = vadd.f32 %v508, %v577
    %v605 = vadd.f32 %v527, %v596
    %v606 = vadd.f32 %v510, %v579
    %v607 = vadd.f32 %v529, %v598
    %v608 = vadd.f32 %v600, %v602
    %v609 = vadd.f32 %v608, %v604
    %v610 = vadd.f32 %v609, %v606
    %v611 = vrot.slane %v610, 4
    %v612 = vadd.f32 %v610, %v611
    %v613 = vrot.slane %v612, 2
    %v614 = vadd.f32 %v612, %v613
    %v615 = vrot.slane %v614, 1
    %v616 = vadd.f32 %v614, %v615
    %v617 = vadd.f32 %v601, %v603
    %v618 = vadd.f32 %v617, %v605
    %v619 = vadd.f32 %v618, %v607
    %v620 = vrot.slane %v619, 4
    %v621 = vadd.f32 %v619, %v620
    %v622 = vrot.slane %v621, 2
    %v623 = vadd.f32 %v621, %v622
    %v624 = vrot.slane %v623, 1
    %v625 = vadd.f32 %v623, %v624
    %v626 = vld [vmem:[%s3] sm:$0xff]
    %v627 = vld [vmem:[%s3 + $0x8] sm:$0xff]
    %v628 = vld [vmem:[%s3 + $0x10] sm:$0xff]
    %v629 = vld [vmem:[%s3 + $0x18] sm:$0xff]
    %v630 = vld [vmem:[%s3 + $0x20] sm:$0xff]
    %v631 = vld [vmem:[%s3 + $0x28] sm:$0xff]
    %v632 = vld [vmem:[%s3 + $0x30] sm:$0xff]
    %v633 = vld [vmem:[%s3 + $0x38] sm:$0xff]
    %v634 = vld [vmem:[%s3 + $0x40] sm:$0xff]
    %v635 = vld [vmem:[%s3 + $0x48] sm:$0xff]
    %v636 = vld [vmem:[%s3 + $0x50] sm:$0xff]
    %v637 = vld [vmem:[%s3 + $0x58] sm:$0xff]
    %v638 = vld [vmem:[%s3 + $0x60] sm:$0xff]
    %v639 = vld [vmem:[%s3 + $0x68] sm:$0xff]
    %v640 = vld [vmem:[%s3 + $0x70] sm:$0xff]
    %v641 = vld [vmem:[%s3 + $0x78] sm:$0xff]
    %v642 = vld [vmem:[%s3 + $0x80] sm:$0xff]
    %v643 = vld [vmem:[%s3 + $0x88] sm:$0xff]
    %v644 = vld [vmem:[%s3 + $0x90] sm:$0xff]
    %v645 = vld [vmem:[%s3 + $0x98] sm:$0xff]
    %v646 = vld [vmem:[%s3 + $0xa0] sm:$0xff]
    %v647 = vld [vmem:[%s3 + $0xa8] sm:$0xff]
    %v648 = vld [vmem:[%s3 + $0xb0] sm:$0xff]
    %v649 = vld [vmem:[%s3 + $0xb8] sm:$0xff]
    %v650 = vld [vmem:[%s3 + $0xc0] sm:$0xff]
    %v651 = vld [vmem:[%s3 + $0xc8] sm:$0xff]
    %v652 = vld [vmem:[%s3 + $0xd0] sm:$0xff]
    %v653 = vld [vmem:[%s3 + $0xd8] sm:$0xff]
    %v654 = vld [vmem:[%s3 + $0xe0] sm:$0xff]
    %v655 = vld [vmem:[%s3 + $0xe8] sm:$0xff]
    %v656 = vld [vmem:[%s3 + $0xf0] sm:$0xff]
    %v657 = vld [vmem:[%s3 + $0xf8] sm:$0xff]
    %658 = vmatpush.msra.mxu0 %v641
    %659 = vmatpush.msra.mxu0 %v640
    %660 = vmatpush.msra.mxu0 %v639
    %661 = vmatpush.msra.mxu0 %v638
    %662 = vmatpush.msra.mxu0 %v637
    %663 = vmatpush.msra.mxu0 %v636
    %664 = vmatpush.msra.mxu0 %v635
    %665 = vmatpush.msra.mxu0 %v634
    %666 = vmatpush.msra.mxu0 %v633
    %667 = vmatpush.msra.mxu0 %v632
    %668 = vmatpush.msra.mxu0 %v631
    %669 = vmatpush.msra.mxu0 %v630
    %670 = vmatpush.msra.mxu0 %v629
    %671 = vmatpush.msra.mxu0 %v628
    %672 = vmatpush.msra.mxu0 %v627
    %673 = vmatpush.msra.mxu0 %v626
    %674 = vmatmul.f32.gmra.mxu0 %v616
    %v675 = vpop.f32.mrf.mxu0
    %v676 = vadd.f32 0.0, %v675
    %677 = vdwg.mxu0
    %678 = vmatpush.msra.mxu0 %v657
    %679 = vmatpush.msra.mxu0 %v656
    %680 = vmatpush.msra.mxu0 %v655
    %681 = vmatpush.msra.mxu0 %v654
    %682 = vmatpush.msra.mxu0 %v653
    %683 = vmatpush.msra.mxu0 %v652
    %684 = vmatpush.msra.mxu0 %v651
    %685 = vmatpush.msra.mxu0 %v650
    %686 = vmatpush.msra.mxu0 %v649
    %687 = vmatpush.msra.mxu0 %v648
    %688 = vmatpush.msra.mxu0 %v647
    %689 = vmatpush.msra.mxu0 %v646
    %690 = vmatpush.msra.mxu0 %v645
    %691 = vmatpush.msra.mxu0 %v644
    %692 = vmatpush.msra.mxu0 %v643
    %693 = vmatpush.msra.mxu0 %v642
    %694 = vmatmul.f32.gmra.mxu0 %v625
    %v695 = vpop.f32.mrf.mxu0
    %v696 = vadd.f32 %v676, %v695
    %697 = vdwg.mxu0
    %v698 = vmul.f32 %v696, 0.0009765625
    %v699 = vld [vmem:[#allocation2] sm:$0xff]
    %v700 = vld [vmem:[#allocation2 + $0x8] sm:$0xff]
    %vm701 = vcmask 64512
    %v703 = vsel %vm701, %v698, 0
    %705 = vmatpush.msra.mxu0 0.0
    %706 = vmatpush.msra.mxu0 0.0
    %707 = vmatpush.msra.mxu0 0.0
    %708 = vmatpush.msra.mxu0 0.0
    %709 = vmatpush.msra.mxu0 0.0
    %710 = vmatpush.msra.mxu0 0.0
    %711 = vmatpush.msra.mxu0 0.0
    %712 = vmatpush.msra.mxu0 0.0
    %713 = vmatpush.msra.mxu0 0.0
    %714 = vmatpush.msra.mxu0 0.0
    %715 = vmatpush.msra.mxu0 0.0
    %716 = vmatpush.msra.mxu0 0.0
    %717 = vmatpush.msra.mxu0 0.0
    %718 = vmatpush.msra.mxu0 0.0
    %719 = vmatpush.msra.mxu0 0.0
    %720 = vmatpush.msra.mxu0 %v699
    %721 = vmatmul.f32.gmra.mxu0 %v703
    %v722 = vpop.f32.mrf.mxu0
    %v723 = vadd.f32 0.0, %v722
    %724 = vdwg.mxu0
    %725 = vmatpush.msra.mxu0 0.0
    %726 = vmatpush.msra.mxu0 0.0
    %727 = vmatpush.msra.mxu0 0.0
    %728 = vmatpush.msra.mxu0 0.0
    %729 = vmatpush.msra.mxu0 0.0
    %730 = vmatpush.msra.mxu0 0.0
    %731 = vmatpush.msra.mxu0 0.0
    %732 = vmatpush.msra.mxu0 0.0
    %733 = vmatpush.msra.mxu0 0.0
    %734 = vmatpush.msra.mxu0 0.0
    %735 = vmatpush.msra.mxu0 0.0
    %736 = vmatpush.msra.mxu0 0.0
    %737 = vmatpush.msra.mxu0 0.0
    %738 = vmatpush.msra.mxu0 0.0
    %739 = vmatpush.msra.mxu0 0.0
    %740 = vmatpush.msra.mxu0 %v700
    %741 = vmatmul.f32.gmra.mxu0 %v703
    %v742 = vpop.f32.mrf.mxu0
    %v743 = vadd.f32 0.0, %v742
    %744 = vdwg.mxu0
    %v745 = vperm.slane %v723, 0
    %v746 = vperm.slane %v743, 0
    %v747 = vsub.f32 %v600, %v745
    %v748 = vsub.f32 %v601, %v746
    %v749 = vsub.f32 %v602, %v745
    %v750 = vsub.f32 %v603, %v746
    %v751 = vsub.f32 %v604, %v745
    %v752 = vsub.f32 %v605, %v746
    %v753 = vsub.f32 %v606, %v745
    %v754 = vsub.f32 %v607, %v746
    %v755 = vmul.f32 %v747, %v747
    %v756 = vmul.f32 %v748, %v748
    %v757 = vmul.f32 %v749, %v749
    %v758 = vmul.f32 %v750, %v750
    %v759 = vmul.f32 %v751, %v751
    %v760 = vmul.f32 %v752, %v752
    %v761 = vmul.f32 %v753, %v753
    %v762 = vmul.f32 %v754, %v754
    %v763 = vadd.f32 %v755, %v757
    %v764 = vadd.f32 %v763, %v759
    %v765 = vadd.f32 %v764, %v761
    %v766 = vrot.slane %v765, 4
    %v767 = vadd.f32 %v765, %v766
    %v768 = vrot.slane %v767, 2
    %v769 = vadd.f32 %v767, %v768
    %v770 = vrot.slane %v769, 1
    %v771 = vadd.f32 %v769, %v770
    %v772 = vadd.f32 %v756, %v758
    %v773 = vadd.f32 %v772, %v760
    %v774 = vadd.f32 %v773, %v762
    %v775 = vrot.slane %v774, 4
    %v776 = vadd.f32 %v774, %v775
    %v777 = vrot.slane %v776, 2
    %v778 = vadd.f32 %v776, %v777
    %v779 = vrot.slane %v778, 1
    %v780 = vadd.f32 %v778, %v779
    %781 = vmatpush.msra.mxu0 %v641
    %782 = vmatpush.msra.mxu0 %v640
    %783 = vmatpush.msra.mxu0 %v639
    %784 = vmatpush.msra.mxu0 %v638
    %785 = vmatpush.msra.mxu0 %v637
    %786 = vmatpush.msra.mxu0 %v636
    %787 = vmatpush.msra.mxu0 %v635
    %788 = vmatpush.msra.mxu0 %v634
    %789 = vmatpush.msra.mxu0 %v633
    %790 = vmatpush.msra.mxu0 %v632
    %791 = vmatpush.msra.mxu0 %v631
    %792 = vmatpush.msra.mxu0 %v630
    %793 = vmatpush.msra.mxu0 %v629
    %794 = vmatpush.msra.mxu0 %v628
    %795 = vmatpush.msra.mxu0 %v627
    %796 = vmatpush.msra.mxu0 %v626
    %797 = vmatmul.f32.gmra.mxu0 %v771
    %v798 = vpop.f32.mrf.mxu0
    %v799 = vadd.f32 0.0, %v798
    %800 = vdwg.mxu0
    %801 = vmatpush.msra.mxu0 %v657
    %802 = vmatpush.msra.mxu0 %v656
    %803 = vmatpush.msra.mxu0 %v655
    %804 = vmatpush.msra.mxu0 %v654
    %805 = vmatpush.msra.mxu0 %v653
    %806 = vmatpush.msra.mxu0 %v652
    %807 = vmatpush.msra.mxu0 %v651
    %808 = vmatpush.msra.mxu0 %v650
    %809 = vmatpush.msra.mxu0 %v649
    %810 = vmatpush.msra.mxu0 %v648
    %811 = vmatpush.msra.mxu0 %v647
    %812 = vmatpush.msra.mxu0 %v646
    %813 = vmatpush.msra.mxu0 %v645
    %814 = vmatpush.msra.mxu0 %v644
    %815 = vmatpush.msra.mxu0 %v643
    %816 = vmatpush.msra.mxu0 %v642
    %817 = vmatmul.f32.gmra.mxu0 %v780
    %v818 = vpop.f32.mrf.mxu0
    %v819 = vadd.f32 %v799, %v818
    %820 = vdwg.mxu0
    %v821 = vmul.f32 %v819, 0.0009765625
    %v822 = vadd.f32 %v821, 1e-05
    %v823 = vrsqrt.pop %v822
    %v824 = vmul.f32 %v823, %v822
    %v825 = vmul.f32 %v824, %v823
    %v826 = vmul.f32 0.5, %v825
    %v827 = vsub.f32 1.5, %v826
    %v828 = vmul.f32 %v823, %v827
    %vm829 = vweird.f32 %v822
    %vm830 = vweird.f32 %v823
    %vm831 = vmor %vm829, %vm830
    %v832 = vsel %vm831, %v823, %v828
    %v834 = vsel %vm701, %v832, 0
    %836 = vmatpush.msra.mxu0 0.0
    %837 = vmatpush.msra.mxu0 0.0
    %838 = vmatpush.msra.mxu0 0.0
    %839 = vmatpush.msra.mxu0 0.0
    %840 = vmatpush.msra.mxu0 0.0
    %841 = vmatpush.msra.mxu0 0.0
    %842 = vmatpush.msra.mxu0 0.0
    %843 = vmatpush.msra.mxu0 0.0
    %844 = vmatpush.msra.mxu0 0.0
    %845 = vmatpush.msra.mxu0 0.0
    %846 = vmatpush.msra.mxu0 0.0
    %847 = vmatpush.msra.mxu0 0.0
    %848 = vmatpush.msra.mxu0 0.0
    %849 = vmatpush.msra.mxu0 0.0
    %850 = vmatpush.msra.mxu0 0.0
    %851 = vmatpush.msra.mxu0 %v699
    %852 = vmatmul.f32.gmra.mxu0 %v834
    %v853 = vpop.f32.mrf.mxu0
    %v854 = vadd.f32 0.0, %v853
    %855 = vdwg.mxu0
    %856 = vmatpush.msra.mxu0 0.0
    %857 = vmatpush.msra.mxu0 0.0
    %858 = vmatpush.msra.mxu0 0.0
    %859 = vmatpush.msra.mxu0 0.0
    %860 = vmatpush.msra.mxu0 0.0
    %861 = vmatpush.msra.mxu0 0.0
    %862 = vmatpush.msra.mxu0 0.0
    %863 = vmatpush.msra.mxu0 0.0
    %864 = vmatpush.msra.mxu0 0.0
    %865 = vmatpush.msra.mxu0 0.0
    %866 = vmatpush.msra.mxu0 0.0
    %867 = vmatpush.msra.mxu0 0.0
    %868 = vmatpush.msra.mxu0 0.0
    %869 = vmatpush.msra.mxu0 0.0
    %870 = vmatpush.msra.mxu0 0.0
    %871 = vmatpush.msra.mxu0 %v700
    %872 = vmatmul.f32.gmra.mxu0 %v834
    %v873 = vpop.f32.mrf.mxu0
    %v874 = vadd.f32 0.0, %v873
    %875 = vdwg.mxu0
    %v876 = vperm.slane %v854, 0
    %v877 = vperm.slane %v874, 0
    %v878 = vmul.f32 %v747, %v876
    %v879 = vmul.f32 %v748, %v877
    %v880 = vmul.f32 %v749, %v876
    %v881 = vmul.f32 %v750, %v877
    %v882 = vmul.f32 %v751, %v876
    %v883 = vmul.f32 %v752, %v877
    %v884 = vmul.f32 %v753, %v876
    %v885 = vmul.f32 %v754, %v877
    %v886 = vmax.f32 %v878, 0.0
    %v887 = vmax.f32 %v879, 0.0
    %v888 = vmax.f32 %v880, 0.0
    %v889 = vmax.f32 %v881, 0.0
    %v890 = vmax.f32 %v882, 0.0
    %v891 = vmax.f32 %v883, 0.0
    %v892 = vmax.f32 %v884, 0.0
    %v893 = vmax.f32 %v885, 0.0
    %894 = vst [vmem:[#allocation5] sm:$0xff] %v886
    %895 = vst [vmem:[#allocation5 + $0x8] sm:$0xff] %v887
    %896 = vst [vmem:[#allocation5 + $0x10] sm:$0xff] %v888
    %897 = vst [vmem:[#allocation5 + $0x18] sm:$0xff] %v889
    %898 = vst [vmem:[#allocation5 + $0x20] sm:$0xff] %v890
    %899 = vst [vmem:[#allocation5 + $0x28] sm:$0xff] %v891
    %900 = vst [vmem:[#allocation5 + $0x30] sm:$0xff] %v892
    %901 = vst [vmem:[#allocation5 + $0x38] sm:$0xff] %v893
    %v902 = vld [vmem:[%s2] sm:$0xf]
    %v903 = vld [vmem:[%s2 + $0x4] sm:$0xf]
    %v904 = vld [vmem:[%s2 + $0x8] sm:$0xf]
    %v905 = vld [vmem:[%s2 + $0xc] sm:$0xf]
    %v906 = vld [vmem:[%s398] sm:$0xf]
    %v907 = vld [vmem:[%s398 + $0x4] sm:$0xf]
    %v908 = vld [vmem:[%s398 + $0x8] sm:$0xf]
    %v909 = vld [vmem:[%s398 + $0xc] sm:$0xf]
    %v914 = vunpack.c.l.b16 %v906
    %v915 = vunpack.c.l.b16 %v907
    %v916 = vunpack.c.l.b16 %v908
    %v917 = vunpack.c.l.b16 %v909
    %v918 = vpack.c.b16 %v915, %v914
    %v919 = vpack.c.b16 %v917, %v916
    %v922 = vunpack.c.l.b16 %v389
    %v923 = vunpack.c.h.b16 %v389
    %v924 = vunpack.c.l.b16 %v392
    %v925 = vunpack.c.h.b16 %v392
    %v926 = vpack.c.b16 %v924, %v922
    %v927 = vpack.c.b16 %v925, %v923
    %v931 = vsel %vm76, %v918, 0
    %v934 = vsel %vm76, %v919, 0
    %936 = vmatpush.bf16.msra.mxu0 0
    %937 = vmatpush.bf16.msra.mxu0 0
    %938 = vmatpush.bf16.msra.mxu0 0
    %939 = vmatpush.bf16.msra.mxu0 0
    %940 = vmatpush.bf16.msra.mxu0 0
    %941 = vmatpush.bf16.msra.mxu0 0
    %942 = vmatpush.bf16.msra.mxu0 0
    %943 = vmatpush.bf16.msra.mxu0 %v926
    %944 = vmatmul.bf16.gmra.mxu0 %v931
    %v945 = vpop.f32.mrf.mxu0
    %v946 = vadd.f32 0.0, %v945
    %v947 = vpop.f32.mrf.mxu0
    %v948 = vadd.f32 0.0, %v947
    %949 = vmatmul.bf16.gmra.mxu0 %v934
    %v950 = vpop.f32.mrf.mxu0
    %v951 = vadd.f32 0.0, %v950
    %v952 = vpop.f32.mrf.mxu0
    %v953 = vadd.f32 0.0, %v952
    %954 = vdwg.mxu0
    %955 = vmatpush.bf16.msra.mxu0 0
    %956 = vmatpush.bf16.msra.mxu0 0
    %957 = vmatpush.bf16.msra.mxu0 0
    %958 = vmatpush.bf16.msra.mxu0 0
    %959 = vmatpush.bf16.msra.mxu0 0
    %960 = vmatpush.bf16.msra.mxu0 0
    %961 = vmatpush.bf16.msra.mxu0 0
    %962 = vmatpush.bf16.msra.mxu0 %v927
    %963 = vmatmul.bf16.gmra.mxu0 %v931
    %v964 = vpop.f32.mrf.mxu0
    %v965 = vadd.f32 0.0, %v964
    %v966 = vpop.f32.mrf.mxu0
    %v967 = vadd.f32 0.0, %v966
    %968 = vmatmul.bf16.gmra.mxu0 %v934
    %v969 = vpop.f32.mrf.mxu0
    %v970 = vadd.f32 0.0, %v969
    %v971 = vpop.f32.mrf.mxu0
    %v972 = vadd.f32 0.0, %v971
    %973 = vdwg.mxu0
    %v978 = vunpack.c.l.b16 %v902
    %v979 = vunpack.c.l.b16 %v903
    %v980 = vunpack.c.l.b16 %v904
    %v981 = vunpack.c.l.b16 %v905
    %v982 = vpack.c.b16 %v979, %v978
    %v983 = vpack.c.b16 %v981, %v980
    %v986 = vunpack.c.l.b16 %v388
    %v987 = vunpack.c.h.b16 %v388
    %v988 = vunpack.c.l.b16 %v391
    %v989 = vunpack.c.h.b16 %v391
    %v990 = vpack.c.b16 %v988, %v986
    %v991 = vpack.c.b16 %v989, %v987
    %v995 = vsel %vm76, %v982, 0
    %v998 = vsel %vm76, %v983, 0
    %1000 = vmatpush.bf16.msra.mxu0 0
    %1001 = vmatpush.bf16.msra.mxu0 0
    %1002 = vmatpush.bf16.msra.mxu0 0
    %1003 = vmatpush.bf16.msra.mxu0 0
    %1004 = vmatpush.bf16.msra.mxu0 0
    %1005 = vmatpush.bf16.msra.mxu0 0
    %1006 = vmatpush.bf16.msra.mxu0 0
    %1007 = vmatpush.bf16.msra.mxu0 %v990
    %1008 = vmatmul.bf16.gmra.mxu0 %v995
    %v1009 = vpop.f32.mrf.mxu0
    %v1010 = vadd.f32 %v946, %v1009
    %v1011 = vpop.f32.mrf.mxu0
    %v1012 = vadd.f32 %v948, %v1011
    %1013 = vmatmul.bf16.gmra.mxu0 %v998
    %v1014 = vpop.f32.mrf.mxu0
    %v1015 = vadd.f32 %v951, %v1014
    %v1016 = vpop.f32.mrf.mxu0
    %v1017 = vadd.f32 %v953, %v1016
    %1018 = vdwg.mxu0
    %1019 = vmatpush.bf16.msra.mxu0 0
    %1020 = vmatpush.bf16.msra.mxu0 0
    %1021 = vmatpush.bf16.msra.mxu0 0
    %1022 = vmatpush.bf16.msra.mxu0 0
    %1023 = vmatpush.bf16.msra.mxu0 0
    %1024 = vmatpush.bf16.msra.mxu0 0
    %1025 = vmatpush.bf16.msra.mxu0 0
    %1026 = vmatpush.bf16.msra.mxu0 %v991
    %1027 = vmatmul.bf16.gmra.mxu0 %v995
    %v1028 = vpop.f32.mrf.mxu0
    %v1029 = vadd.f32 %v965, %v1028
    %v1030 = vpop.f32.mrf.mxu0
    %v1031 = vadd.f32 %v967, %v1030
    %1032 = vmatmul.bf16.gmra.mxu0 %v998
    %v1033 = vpop.f32.mrf.mxu0
    %v1034 = vadd.f32 %v970, %v1033
    %v1035 = vpop.f32.mrf.mxu0
    %v1036 = vadd.f32 %v972, %v1035
    %1037 = vdwg.mxu0
    %v1038 = vld [vmem:[%s531] sm:$0xf]
    %v1039 = vld [vmem:[%s531 + $0x4] sm:$0xf]
    %v1040 = vld [vmem:[%s531 + $0x8] sm:$0xf]
    %v1041 = vld [vmem:[%s531 + $0xc] sm:$0xf]
    %v1046 = vunpack.c.l.b16 %v1038
    %v1047 = vunpack.c.l.b16 %v1039
    %v1048 = vunpack.c.l.b16 %v1040
    %v1049 = vunpack.c.l.b16 %v1041
    %v1050 = vpack.c.b16 %v1047, %v1046
    %v1051 = vpack.c.b16 %v1049, %v1048
    %v1054 = vunpack.c.l.b16 %v390
    %v1055 = vunpack.c.h.b16 %v390
    %v1056 = vunpack.c.l.b16 %v393
    %v1057 = vunpack.c.h.b16 %v393
    %v1058 = vpack.c.b16 %v1056, %v1054
    %v1059 = vpack.c.b16 %v1057, %v1055
    %v1063 = vsel %vm76, %v1050, 0
    %v1066 = vsel %vm76, %v1051, 0
    %1068 = vmatpush.bf16.msra.mxu0 0
    %1069 = vmatpush.bf16.msra.mxu0 0
    %1070 = vmatpush.bf16.msra.mxu0 0
    %1071 = vmatpush.bf16.msra.mxu0 0
    %1072 = vmatpush.bf16.msra.mxu0 0
    %1073 = vmatpush.bf16.msra.mxu0 0
    %1074 = vmatpush.bf16.msra.mxu0 0
    %1075 = vmatpush.bf16.msra.mxu0 %v1058
    %1076 = vmatmul.bf16.gmra.mxu0 %v1063
    %v1077 = vpop.f32.mrf.mxu0
    %v1078 = vadd.f32 0.0, %v1077
    %v1079 = vpop.f32.mrf.mxu0
    %v1080 = vadd.f32 0.0, %v1079
    %1081 = vmatmul.bf16.gmra.mxu0 %v1066
    %v1082 = vpop.f32.mrf.mxu0
    %v1083 = vadd.f32 0.0, %v1082
    %v1084 = vpop.f32.mrf.mxu0
    %v1085 = vadd.f32 0.0, %v1084
    %1086 = vdwg.mxu0
    %1087 = vmatpush.bf16.msra.mxu0 0
    %1088 = vmatpush.bf16.msra.mxu0 0
    %1089 = vmatpush.bf16.msra.mxu0 0
    %1090 = vmatpush.bf16.msra.mxu0 0
    %1091 = vmatpush.bf16.msra.mxu0 0
    %1092 = vmatpush.bf16.msra.mxu0 0
    %1093 = vmatpush.bf16.msra.mxu0 0
    %1094 = vmatpush.bf16.msra.mxu0 %v1059
    %1095 = vmatmul.bf16.gmra.mxu0 %v1063
    %v1096 = vpop.f32.mrf.mxu0
    %v1097 = vadd.f32 0.0, %v1096
    %v1098 = vpop.f32.mrf.mxu0
    %v1099 = vadd.f32 0.0, %v1098
    %1100 = vmatmul.bf16.gmra.mxu0 %v1066
    %v1101 = vpop.f32.mrf.mxu0
    %v1102 = vadd.f32 0.0, %v1101
    %v1103 = vpop.f32.mrf.mxu0
    %v1104 = vadd.f32 0.0, %v1103
    %1105 = vdwg.mxu0
    %v1106 = vadd.f32 %v1010, %v1078
    %v1107 = vadd.f32 %v1029, %v1097
    %v1108 = vadd.f32 %v1012, %v1080
    %v1109 = vadd.f32 %v1031, %v1099
    %v1110 = vadd.f32 %v1015, %v1083
    %v1111 = vadd.f32 %v1034, %v1102
    %v1112 = vadd.f32 %v1017, %v1085
    %v1113 = vadd.f32 %v1036, %v1104
    %v1114 = vadd.f32 %v1106, %v1108
    %v1115 = vadd.f32 %v1114, %v1110
    %v1116 = vadd.f32 %v1115, %v1112
    %v1117 = vrot.slane %v1116, 4
    %v1118 = vadd.f32 %v1116, %v1117
    %v1119 = vrot.slane %v1118, 2
    %v1120 = vadd.f32 %v1118, %v1119
    %v1121 = vrot.slane %v1120, 1
    %v1122 = vadd.f32 %v1120, %v1121
    %v1123 = vadd.f32 %v1107, %v1109
    %v1124 = vadd.f32 %v1123, %v1111
    %v1125 = vadd.f32 %v1124, %v1113
    %v1126 = vrot.slane %v1125, 4
    %v1127 = vadd.f32 %v1125, %v1126
    %v1128 = vrot.slane %v1127, 2
    %v1129 = vadd.f32 %v1127, %v1128
    %v1130 = vrot.slane %v1129, 1
    %v1131 = vadd.f32 %v1129, %v1130
    %v1132 = vld [vmem:[%s3] sm:$0xff]
    %v1133 = vld [vmem:[%s3 + $0x8] sm:$0xff]
    %v1134 = vld [vmem:[%s3 + $0x10] sm:$0xff]
    %v1135 = vld [vmem:[%s3 + $0x18] sm:$0xff]
    %v1136 = vld [vmem:[%s3 + $0x20] sm:$0xff]
    %v1137 = vld [vmem:[%s3 + $0x28] sm:$0xff]
    %v1138 = vld [vmem:[%s3 + $0x30] sm:$0xff]
    %v1139 = vld [vmem:[%s3 + $0x38] sm:$0xff]
    %v1140 = vld [vmem:[%s3 + $0x40] sm:$0xff]
    %v1141 = vld [vmem:[%s3 + $0x48] sm:$0xff]
    %v1142 = vld [vmem:[%s3 + $0x50] sm:$0xff]
    %v1143 = vld [vmem:[%s3 + $0x58] sm:$0xff]
    %v1144 = vld [vmem:[%s3 + $0x60] sm:$0xff]
    %v1145 = vld [vmem:[%s3 + $0x68] sm:$0xff]
    %v1146 = vld [vmem:[%s3 + $0x70] sm:$0xff]
    %v1147 = vld [vmem:[%s3 + $0x78] sm:$0xff]
    %v1148 = vld [vmem:[%s3 + $0x80] sm:$0xff]
    %v1149 = vld [vmem:[%s3 + $0x88] sm:$0xff]
    %v1150 = vld [vmem:[%s3 + $0x90] sm:$0xff]
    %v1151 = vld [vmem:[%s3 + $0x98] sm:$0xff]
    %v1152 = vld [vmem:[%s3 + $0xa0] sm:$0xff]
    %v1153 = vld [vmem:[%s3 + $0xa8] sm:$0xff]
    %v1154 = vld [vmem:[%s3 + $0xb0] sm:$0xff]
    %v1155 = vld [vmem:[%s3 + $0xb8] sm:$0xff]
    %v1156 = vld [vmem:[%s3 + $0xc0] sm:$0xff]
    %v1157 = vld [vmem:[%s3 + $0xc8] sm:$0xff]
    %v1158 = vld [vmem:[%s3 + $0xd0] sm:$0xff]
    %v1159 = vld [vmem:[%s3 + $0xd8] sm:$0xff]
    %v1160 = vld [vmem:[%s3 + $0xe0] sm:$0xff]
    %v1161 = vld [vmem:[%s3 + $0xe8] sm:$0xff]
    %v1162 = vld [vmem:[%s3 + $0xf0] sm:$0xff]
    %v1163 = vld [vmem:[%s3 + $0xf8] sm:$0xff]
    %1164 = vmatpush.msra.mxu0 %v1147
    %1165 = vmatpush.msra.mxu0 %v1146
    %1166 = vmatpush.msra.mxu0 %v1145
    %1167 = vmatpush.msra.mxu0 %v1144
    %1168 = vmatpush.msra.mxu0 %v1143
    %1169 = vmatpush.msra.mxu0 %v1142
    %1170 = vmatpush.msra.mxu0 %v1141
    %1171 = vmatpush.msra.mxu0 %v1140
    %1172 = vmatpush.msra.mxu0 %v1139
    %1173 = vmatpush.msra.mxu0 %v1138
    %1174 = vmatpush.msra.mxu0 %v1137
    %1175 = vmatpush.msra.mxu0 %v1136
    %1176 = vmatpush.msra.mxu0 %v1135
    %1177 = vmatpush.msra.mxu0 %v1134
    %1178 = vmatpush.msra.mxu0 %v1133
    %1179 = vmatpush.msra.mxu0 %v1132
    %1180 = vmatmul.f32.gmra.mxu0 %v1122
    %v1181 = vpop.f32.mrf.mxu0
    %v1182 = vadd.f32 0.0, %v1181
    %1183 = vdwg.mxu0
    %1184 = vmatpush.msra.mxu0 %v1163
    %1185 = vmatpush.msra.mxu0 %v1162
    %1186 = vmatpush.msra.mxu0 %v1161
    %1187 = vmatpush.msra.mxu0 %v1160
    %1188 = vmatpush.msra.mxu0 %v1159
    %1189 = vmatpush.msra.mxu0 %v1158
    %1190 = vmatpush.msra.mxu0 %v1157
    %1191 = vmatpush.msra.mxu0 %v1156
    %1192 = vmatpush.msra.mxu0 %v1155
    %1193 = vmatpush.msra.mxu0 %v1154
    %1194 = vmatpush.msra.mxu0 %v1153
    %1195 = vmatpush.msra.mxu0 %v1152
    %1196 = vmatpush.msra.mxu0 %v1151
    %1197 = vmatpush.msra.mxu0 %v1150
    %1198 = vmatpush.msra.mxu0 %v1149
    %1199 = vmatpush.msra.mxu0 %v1148
    %1200 = vmatmul.f32.gmra.mxu0 %v1131
    %v1201 = vpop.f32.mrf.mxu0
    %v1202 = vadd.f32 %v1182, %v1201
    %1203 = vdwg.mxu0
    %v1204 = vmul.f32 %v1202, 0.0009765625
    %v1205 = vld [vmem:[#allocation2] sm:$0xff]
    %v1206 = vld [vmem:[#allocation2 + $0x8] sm:$0xff]
    %v1208 = vsel %vm701, %v1204, 0
    %1210 = vmatpush.msra.mxu0 0.0
    %1211 = vmatpush.msra.mxu0 0.0
    %1212 = vmatpush.msra.mxu0 0.0
    %1213 = vmatpush.msra.mxu0 0.0
    %1214 = vmatpush.msra.mxu0 0.0
    %1215 = vmatpush.msra.mxu0 0.0
    %1216 = vmatpush.msra.mxu0 0.0
    %1217 = vmatpush.msra.mxu0 0.0
    %1218 = vmatpush.msra.mxu0 0.0
    %1219 = vmatpush.msra.mxu0 0.0
    %1220 = vmatpush.msra.mxu0 0.0
    %1221 = vmatpush.msra.mxu0 0.0
    %1222 = vmatpush.msra.mxu0 0.0
    %1223 = vmatpush.msra.mxu0 0.0
    %1224 = vmatpush.msra.mxu0 0.0
    %1225 = vmatpush.msra.mxu0 %v1205
    %1226 = vmatmul.f32.gmra.mxu0 %v1208
    %v1227 = vpop.f32.mrf.mxu0
    %v1228 = vadd.f32 0.0, %v1227
    %1229 = vdwg.mxu0
    %1230 = vmatpush.msra.mxu0 0.0
    %1231 = vmatpush.msra.mxu0 0.0
    %1232 = vmatpush.msra.mxu0 0.0
    %1233 = vmatpush.msra.mxu0 0.0
    %1234 = vmatpush.msra.mxu0 0.0
    %1235 = vmatpush.msra.mxu0 0.0
    %1236 = vmatpush.msra.mxu0 0.0
    %1237 = vmatpush.msra.mxu0 0.0
    %1238 = vmatpush.msra.mxu0 0.0
    %1239 = vmatpush.msra.mxu0 0.0
    %1240 = vmatpush.msra.mxu0 0.0
    %1241 = vmatpush.msra.mxu0 0.0
    %1242 = vmatpush.msra.mxu0 0.0
    %1243 = vmatpush.msra.mxu0 0.0
    %1244 = vmatpush.msra.mxu0 0.0
    %1245 = vmatpush.msra.mxu0 %v1206
    %1246 = vmatmul.f32.gmra.mxu0 %v1208
    %v1247 = vpop.f32.mrf.mxu0
    %v1248 = vadd.f32 0.0, %v1247
    %1249 = vdwg.mxu0
    %v1250 = vperm.slane %v1228, 0
    %v1251 = vperm.slane %v1248, 0
    %v1252 = vsub.f32 %v1106, %v1250
    %v1253 = vsub.f32 %v1107, %v1251
    %v1254 = vsub.f32 %v1108, %v1250
    %v1255 = vsub.f32 %v1109, %v1251
    %v1256 = vsub.f32 %v1110, %v1250
    %v1257 = vsub.f32 %v1111, %v1251
    %v1258 = vsub.f32 %v1112, %v1250
    %v1259 = vsub.f32 %v1113, %v1251
    %v1260 = vmul.f32 %v1252, %v1252
    %v1261 = vmul.f32 %v1253, %v1253
    %v1262 = vmul.f32 %v1254, %v1254
    %v1263 = vmul.f32 %v1255, %v1255
    %v1264 = vmul.f32 %v1256, %v1256
    %v1265 = vmul.f32 %v1257, %v1257
    %v1266 = vmul.f32 %v1258, %v1258
    %v1267 = vmul.f32 %v1259, %v1259
    %v1268 = vadd.f32 %v1260, %v1262
    %v1269 = vadd.f32 %v1268, %v1264
    %v1270 = vadd.f32 %v1269, %v1266
    %v1271 = vrot.slane %v1270, 4
    %v1272 = vadd.f32 %v1270, %v1271
    %v1273 = vrot.slane %v1272, 2
    %v1274 = vadd.f32 %v1272, %v1273
    %v1275 = vrot.slane %v1274, 1
    %v1276 = vadd.f32 %v1274, %v1275
    %v1277 = vadd.f32 %v1261, %v1263
    %v1278 = vadd.f32 %v1277, %v1265
    %v1279 = vadd.f32 %v1278, %v1267
    %v1280 = vrot.slane %v1279, 4
    %v1281 = vadd.f32 %v1279, %v1280
    %v1282 = vrot.slane %v1281, 2
    %v1283 = vadd.f32 %v1281, %v1282
    %v1284 = vrot.slane %v1283, 1
    %v1285 = vadd.f32 %v1283, %v1284
    %1286 = vmatpush.msra.mxu0 %v1147
    %1287 = vmatpush.msra.mxu0 %v1146
    %1288 = vmatpush.msra.mxu0 %v1145
    %1289 = vmatpush.msra.mxu0 %v1144
    %1290 = vmatpush.msra.mxu0 %v1143
    %1291 = vmatpush.msra.mxu0 %v1142
    %1292 = vmatpush.msra.mxu0 %v1141
    %1293 = vmatpush.msra.mxu0 %v1140
    %1294 = vmatpush.msra.mxu0 %v1139
    %1295 = vmatpush.msra.mxu0 %v1138
    %1296 = vmatpush.msra.mxu0 %v1137
    %1297 = vmatpush.msra.mxu0 %v1136
    %1298 = vmatpush.msra.mxu0 %v1135
    %1299 = vmatpush.msra.mxu0 %v1134
    %1300 = vmatpush.msra.mxu0 %v1133
    %1301 = vmatpush.msra.mxu0 %v1132
    %1302 = vmatmul.f32.gmra.mxu0 %v1276
    %v1303 = vpop.f32.mrf.mxu0
    %v1304 = vadd.f32 0.0, %v1303
    %1305 = vdwg.mxu0
    %1306 = vmatpush.msra.mxu0 %v1163
    %1307 = vmatpush.msra.mxu0 %v1162
    %1308 = vmatpush.msra.mxu0 %v1161
    %1309 = vmatpush.msra.mxu0 %v1160
    %1310 = vmatpush.msra.mxu0 %v1159
    %1311 = vmatpush.msra.mxu0 %v1158
    %1312 = vmatpush.msra.mxu0 %v1157
    %1313 = vmatpush.msra.mxu0 %v1156
    %1314 = vmatpush.msra.mxu0 %v1155
    %1315 = vmatpush.msra.mxu0 %v1154
    %1316 = vmatpush.msra.mxu0 %v1153
    %1317 = vmatpush.msra.mxu0 %v1152
    %1318 = vmatpush.msra.mxu0 %v1151
    %1319 = vmatpush.msra.mxu0 %v1150
    %1320 = vmatpush.msra.mxu0 %v1149
    %1321 = vmatpush.msra.mxu0 %v1148
    %1322 = vmatmul.f32.gmra.mxu0 %v1285
    %v1323 = vpop.f32.mrf.mxu0
    %v1324 = vadd.f32 %v1304, %v1323
    %1325 = vdwg.mxu0
    %v1326 = vmul.f32 %v1324, 0.0009765625
    %v1327 = vadd.f32 %v1326, 1e-05
    %v1328 = vrsqrt.pop %v1327
    %v1329 = vmul.f32 %v1328, %v1327
    %v1330 = vmul.f32 %v1329, %v1328
    %v1331 = vmul.f32 0.5, %v1330
    %v1332 = vsub.f32 1.5, %v1331
    %v1333 = vmul.f32 %v1328, %v1332
    %vm1334 = vweird.f32 %v1327
    %vm1335 = vweird.f32 %v1328
    %vm1336 = vmor %vm1334, %vm1335
    %v1337 = vsel %vm1336, %v1328, %v1333
    %v1339 = vsel %vm701, %v1337, 0
    %1341 = vmatpush.msra.mxu0 0.0
    %1342 = vmatpush.msra.mxu0 0.0
    %1343 = vmatpush.msra.mxu0 0.0
    %1344 = vmatpush.msra.mxu0 0.0
    %1345 = vmatpush.msra.mxu0 0.0
    %1346 = vmatpush.msra.mxu0 0.0
    %1347 = vmatpush.msra.mxu0 0.0
    %1348 = vmatpush.msra.mxu0 0.0
    %1349 = vmatpush.msra.mxu0 0.0
    %1350 = vmatpush.msra.mxu0 0.0
    %1351 = vmatpush.msra.mxu0 0.0
    %1352 = vmatpush.msra.mxu0 0.0
    %1353 = vmatpush.msra.mxu0 0.0
    %1354 = vmatpush.msra.mxu0 0.0
    %1355 = vmatpush.msra.mxu0 0.0
    %1356 = vmatpush.msra.mxu0 %v1205
    %1357 = vmatmul.f32.gmra.mxu0 %v1339
    %v1358 = vpop.f32.mrf.mxu0
    %v1359 = vadd.f32 0.0, %v1358
    %1360 = vdwg.mxu0
    %1361 = vmatpush.msra.mxu0 0.0
    %1362 = vmatpush.msra.mxu0 0.0
    %1363 = vmatpush.msra.mxu0 0.0
    %1364 = vmatpush.msra.mxu0 0.0
    %1365 = vmatpush.msra.mxu0 0.0
    %1366 = vmatpush.msra.mxu0 0.0
    %1367 = vmatpush.msra.mxu0 0.0
    %1368 = vmatpush.msra.mxu0 0.0
    %1369 = vmatpush.msra.mxu0 0.0
    %1370 = vmatpush.msra.mxu0 0.0
    %1371 = vmatpush.msra.mxu0 0.0
    %1372 = vmatpush.msra.mxu0 0.0
    %1373 = vmatpush.msra.mxu0 0.0
    %1374 = vmatpush.msra.mxu0 0.0
    %1375 = vmatpush.msra.mxu0 0.0
    %1376 = vmatpush.msra.mxu0 %v1206
    %1377 = vmatmul.f32.gmra.mxu0 %v1339
    %v1378 = vpop.f32.mrf.mxu0
    %v1379 = vadd.f32 0.0, %v1378
    %1380 = vdwg.mxu0
    %v1381 = vperm.slane %v1359, 0
    %v1382 = vperm.slane %v1379, 0
    %v1383 = vmul.f32 %v1252, %v1381
    %v1384 = vmul.f32 %v1253, %v1382
    %v1385 = vmul.f32 %v1254, %v1381
    %v1386 = vmul.f32 %v1255, %v1382
    %v1387 = vmul.f32 %v1256, %v1381
    %v1388 = vmul.f32 %v1257, %v1382
    %v1389 = vmul.f32 %v1258, %v1381
    %v1390 = vmul.f32 %v1259, %v1382
    %v1391 = vmax.f32 %v1383, 0.0
    %v1392 = vmax.f32 %v1384, 0.0
    %v1393 = vmax.f32 %v1385, 0.0
    %v1394 = vmax.f32 %v1386, 0.0
    %v1395 = vmax.f32 %v1387, 0.0
    %v1396 = vmax.f32 %v1388, 0.0
    %v1397 = vmax.f32 %v1389, 0.0
    %v1398 = vmax.f32 %v1390, 0.0
    %s1399 = scalar_lea.vmem [#allocation5], 64
    %1400 = vst [vmem:[%s1399] sm:$0xff] %v1391
    %1401 = vst [vmem:[%s1399 + $0x8] sm:$0xff] %v1392
    %1402 = vst [vmem:[%s1399 + $0x10] sm:$0xff] %v1393
    %1403 = vst [vmem:[%s1399 + $0x18] sm:$0xff] %v1394
    %1404 = vst [vmem:[%s1399 + $0x20] sm:$0xff] %v1395
    %1405 = vst [vmem:[%s1399 + $0x28] sm:$0xff] %v1396
    %1406 = vst [vmem:[%s1399 + $0x30] sm:$0xff] %v1397
    %1407 = vst [vmem:[%s1399 + $0x38] sm:$0xff] %v1398
    // Predicated region
    $region26: #{tpu_custom_call.1} parent=1 // pred_check
      _
    $region27: #{tpu_custom_call.1} parent=1 // pred_check_branch
      %1409 = sbr.rel (0) target = $region29
    $region28: #{tpu_custom_call.1} parent=1 // pred_region
      %1411 = vsyncadd [#allocation4], 0
      %s1412 = sshll.u32 [#allocation5], 4
      %s1413 = int_to_ptr.vmem [resolvable:$true] %s1412
      %s1414 = sshll.u32 %s5, 4
      %s1415 = int_to_ptr.hbm [resolvable:$true] %s1414
      %1420 = dma.vmem_to_hbm [thread:$0]  %s1413, 2048, %s1415, [#allocation4], 256, 256, 16
    $region29: #{tpu_custom_call.1} parent=1 // pred_fallthru
      _
    // Predicated region
    $region30: #{tpu_custom_call.1} parent=1 // pred_check
      _
    $region31: #{tpu_custom_call.1} parent=1 // pred_check_branch
      %1422 = sbr.rel (0) target = $region33
    $region32: #{tpu_custom_call.1} parent=1 // pred_region
      %1424 = dma.done [#allocation4], 2048
    $region33: #{tpu_custom_call.1} parent=1 // pred_fallthru
      _
    %1425 = vsyncpa [#allocation3], 1
    %1426 = vsyncpa [#allocation4], 1

</llo_original>
